<compile_context>
chip_gen: v7x
topology: tpu7x:2x2x1
jax: 0.10.0
libtpu: 0.0.40
codegen_flags: <defaults>
</compile_context>

<pallas_src>
import functools

import jax
import jax.numpy as jnp
import numpy as np
from jax.experimental import pallas as pl
from jax.experimental.pallas import tpu as pltpu

EPS = 1e-5  # BatchNorm eps (PyTorch default)


# ----------------------------------------------------------------------------
# Shared tail: length-masked softmax, attention/max pooling, Linear->ReLU->BN
# ----------------------------------------------------------------------------
def _attention_pool_head(TB, L, E, mxu_dtype, o, att, lens_ref,
                         wl_ref, bl_ref, sl_ref, tl_ref, out_ref):
    # length mask + numerically stable softmax over the sequence axis
    pos = jax.lax.broadcasted_iota(jnp.int32, (TB, L, E), 1)
    att = jnp.where(pos < lens_ref[...], att, jnp.float32(-1e9))
    att_max = jnp.max(att, axis=1, keepdims=True)
    p = jnp.exp(att - att_max)
    denom = jnp.sum(p, axis=1, keepdims=True)
    p = p * pl.reciprocal(denom, approx=True)        # EUP reciprocal (~1e-3 rel err)

    # pooling (max pool intentionally unmasked, matching the module)
    o1 = jnp.sum(o * p, axis=1)                      # [TB, E] attention-pooled
    o2 = jnp.max(o, axis=1)                          # [TB, E] max-pooled
    oc = jnp.concatenate([o1, o2], axis=-1)          # [TB, 2E]

    # fused head: Linear -> ReLU -> BN(eval); w already bf16, output lane-dense
    h = jnp.dot(oc.astype(mxu_dtype), wl_ref[...],
                preferred_element_type=jnp.float32) + bl_ref[...]
    h = jnp.maximum(h, 0.0)
    out_ref[0] = h * sl_ref[...] + tl_ref[...]       # [TB, Mp], Mp % 128 == 0


# ----------------------------------------------------------------------------
# Packed kernel (small E, 2E <= 128): both conv paths share lanes.
# ----------------------------------------------------------------------------
def la_kernel_packed(TB, L, E, K, pad, mxu_dtype,
                     x_ref, lens_ref, wdw_ref, wpw_ref, sc_ref, sh_ref,
                     wl_ref, bl_ref, sl_ref, tl_ref, out_ref):
    E2 = 2 * E
    x = x_ref[...]                                         # [TB, L, E]
    halo = jnp.zeros((TB, pad, E), jnp.float32)
    xp = jnp.concatenate([halo, x, halo], axis=1)          # halo in registers
    xp2 = jnp.concatenate([xp, xp], axis=-1)               # [TB, Lp, 2E] lane-packed

    # depthwise conv: one FMA per tap serves both feature & attention paths
    acc = jnp.zeros((TB, L, E2), jnp.float32)
    for k in range(K):
        acc = acc + xp2[:, k:k + L, :] * wdw_ref[k:k + 1, :]

    # pointwise (1x1) conv as ONE block-diagonal MXU matmul, then ReLU + BN
    h = jnp.dot(acc.reshape(TB * L, E2).astype(mxu_dtype), wpw_ref[...],
                preferred_element_type=jnp.float32)
    h = jnp.maximum(h, 0.0) * sc_ref[...] + sh_ref[...]
    h = h.reshape(TB, L, E2)
    o, att = h[:, :, :E], h[:, :, E:]

    _attention_pool_head(TB, L, E, mxu_dtype, o, att, lens_ref,
                         wl_ref, bl_ref, sl_ref, tl_ref, out_ref)


# ----------------------------------------------------------------------------
# Split kernel (general E): two conv paths, two pointwise matmuls.
# ----------------------------------------------------------------------------
def la_kernel_split(TB, L, E, K, pad, mxu_dtype,
                    x_ref, lens_ref,
                    wdw_f_ref, wpw_f_ref, sf_ref, tf_ref,
                    wdw_a_ref, wpw_a_ref, sa_ref, ta_ref,
                    wl_ref, bl_ref, sl_ref, tl_ref, out_ref):
    x = x_ref[...]
    halo = jnp.zeros((TB, pad, E), jnp.float32)
    xp = jnp.concatenate([halo, x, halo], axis=1)          # halo in registers

    acc_f = jnp.zeros((TB, L, E), jnp.float32)
    acc_a = jnp.zeros((TB, L, E), jnp.float32)
    for k in range(K):
        tap = xp[:, k:k + L, :]                            # shared shifted slice
        acc_f = acc_f + tap * wdw_f_ref[k:k + 1, :]
        acc_a = acc_a + tap * wdw_a_ref[k:k + 1, :]

    def pointwise_relu_bn(acc, w_ref, s_ref, t_ref):
        h = jnp.dot(acc.reshape(TB * L, E).astype(mxu_dtype), w_ref[...],
                    preferred_element_type=jnp.float32)
        h = jnp.maximum(h, 0.0) * s_ref[...] + t_ref[...]
        return h.reshape(TB, L, E)

    o = pointwise_relu_bn(acc_f, wpw_f_ref, sf_ref, tf_ref)
    att = pointwise_relu_bn(acc_a, wpw_a_ref, sa_ref, ta_ref)

    _attention_pool_head(TB, L, E, mxu_dtype, o, att, lens_ref,
                         wl_ref, bl_ref, sl_ref, tl_ref, out_ref)


# ----------------------------------------------------------------------------
# Wrapper
# ----------------------------------------------------------------------------
def _default_vmem_limit():
    cap = 128 * 1024 * 1024
    try:
        cap = int(pltpu.get_tpu_info().vmem_capacity_bytes)
    except Exception:
        pass
    # ~96 MB on v5e/v6e (128 MiB VMEM), ~48 MB on v7x (64 MiB VMEM)
    return min(100 * 1024 * 1024, int(cap * 3 // 4))


def light_attention_forward(x, x_lens, params, *, block_b=32,
                            mxu_dtype=jnp.bfloat16,
                            vmem_limit_bytes=None,
                            single_buffer_weights=True):
    """x: [B, 1, L, E] float32, x_lens: [B] int -> [B, final_mlp_dim] float32."""
    B, _, L, E = x.shape
    K = params["wdw_f"].shape[0]
    pad = K // 2
    M = params["w_lin"].shape[1]
    Mp = ((M + 127) // 128) * 128                          # lane-dense head/output

    if vmem_limit_bytes is None:
        vmem_limit_bytes = _default_vmem_limit()

    # --- batch tiling -------------------------------------------------------
    # ~12 live fp32 [L, E] temporaries per batch row (padded block, packed
    # accumulator, conv outputs, softmax terms, double-buffered input).
    per_row_bytes = 12 * L * E * 4
    tb_mem = max(1, (vmem_limit_bytes // 2) // per_row_bytes)
    TB = max(1, min(block_b, tb_mem, B))
    if B >= 2:
        TB = min(TB, (B + 1) // 2)    # >= 2 grid steps: both v7x TCs busy + DMA overlap
    nblk = pl.cdiv(B, TB)
    Bp = nblk * TB

    xs = x.reshape(B, L, E)
    lens = jnp.broadcast_to(x_lens.astype(jnp.int32).reshape(B, 1, 1), (B, 1, E))
    if Bp != B:
        xs = jnp.pad(xs, ((0, Bp - B), (0, 0), (0, 0)))
        lens = jnp.pad(lens, ((0, Bp - B), (0, 0), (0, 0)))

    # --- fold eval-mode BatchNorm into per-channel scale/shift ---------------
    def bn_fold(g, b, m, v):
        s = g * jax.lax.rsqrt(v + EPS)
        return s, b - m * s

    sf, tf = bn_fold(params["gf"], params["bf"], params["mf"], params["vf"])
    sa, ta = bn_fold(params["ga"], params["ba"], params["ma"], params["va"])
    sl, tl = bn_fold(params["g_lin"], params["bt_lin"], params["m_lin"], params["v_lin"])

    # --- head weights: pre-cast to bf16, pad output dim to multiple of 128 ---
    w_lin_p = (jnp.zeros((2 * E, Mp), jnp.float32)
               .at[:, :M].set(params["w_lin"]).astype(mxu_dtype))
    b_lin_p = jnp.zeros((1, Mp), jnp.float32).at[:, :M].set(params["b_lin"])
    sl_p = jnp.zeros((1, Mp), jnp.float32).at[:, :M].set(sl)
    tl_p = jnp.zeros((1, Mp), jnp.float32).at[:, :M].set(tl)

    pack = (2 * E <= 128)             # both paths fit one 128-lane vreg -> pack them
    if pack:
        wdw_pk = jnp.concatenate([params["wdw_f"], params["wdw_a"]], axis=-1)   # [K, 2E]
        wpw_bd = (jnp.zeros((2 * E, 2 * E), jnp.float32)
                  .at[:E, :E].set(params["wpw_f"])
                  .at[E:, E:].set(params["wpw_a"]).astype(mxu_dtype))            # block-diag
        sc_pk = jnp.concatenate([sf, sa], axis=-1)
        sh_pk = jnp.concatenate([tf, ta], axis=-1)
        kernel = functools.partial(la_kernel_packed, TB, L, E, K, pad, mxu_dtype)
        w_args = (wdw_pk, wpw_bd, sc_pk, sh_pk, w_lin_p, b_lin_p, sl_p, tl_p)
    else:
        kernel = functools.partial(la_kernel_split, TB, L, E, K, pad, mxu_dtype)
        w_args = (params["wdw_f"], params["wpw_f"].astype(mxu_dtype), sf, tf,
                  params["wdw_a"], params["wpw_a"].astype(mxu_dtype), sa, ta,
                  w_lin_p, b_lin_p, sl_p, tl_p)

    def build_call(single_buffer):
        def const_spec(arr):
            shape = arr.shape
            n = len(shape)
            idx = lambda b: (0,) * n                       # grid-invariant weights
            if single_buffer:
                return pl.BlockSpec(shape, idx, pipeline_mode=pl.Buffered(1))
            return pl.BlockSpec(shape, idx)

        in_specs = [pl.BlockSpec((TB, L, E), lambda b: (b, 0, 0)),   # activations
                    pl.BlockSpec((TB, 1, E), lambda b: (b, 0, 0))]   # sequence lengths
        in_specs += [const_spec(a) for a in w_args]

        return pl.pallas_call(
            kernel,
            grid=(nblk,),
            in_specs=in_specs,
            # [nblk, TB, Mp]: trailing block dims equal the array dims and the
            # 128-lane store is unmasked (lane-dense).
            out_specs=pl.BlockSpec((1, TB, Mp), lambda b: (b, 0, 0)),
            out_shape=jax.ShapeDtypeStruct((nblk, TB, Mp), jnp.float32),
            compiler_params=pltpu.CompilerParams(
                dimension_semantics=("parallel",),
                vmem_limit_bytes=int(vmem_limit_bytes),
            ),
        )

    args = (xs, lens) + w_args
    try:
        out = build_call(single_buffer_weights)(*args)
    except Exception:
        # Fallback: some jax versions may not accept pipeline_mode on BlockSpec;
        # default double-buffering is correct, just uses more VMEM.
        out = build_call(False)(*args)

    return out.reshape(Bp, Mp)[:B, :M]


# ----------------------------------------------------------------------------
# Pure-JAX reference (same math, no Pallas) for a correctness check
# ----------------------------------------------------------------------------
def reference_forward(x, x_lens, params):
    B, _, L, E = x.shape
    K = params["wdw_f"].shape[0]
    pad = K // 2
    xs = x.reshape(B, L, E)
    xp = jnp.pad(xs, ((0, 0), (pad, pad), (0, 0)))

    def sep_bn(wdw, wpw, g, bt, m, v):
        acc = jnp.zeros((B, L, E), jnp.float32)
        for k in range(K):
            acc = acc + xp[:, k:k + L, :] * wdw[k]
        pw = jnp.einsum("ble,ef->blf", acc, wpw)
        h = jnp.maximum(pw, 0.0)
        return g * (h - m) / jnp.sqrt(v + EPS) + bt

    o = sep_bn(params["wdw_f"], params["wpw_f"], params["gf"], params["bf"],
               params["mf"], params["vf"])
    att = sep_bn(params["wdw_a"], params["wpw_a"], params["ga"], params["ba"],
                 params["ma"], params["va"])
    mask = jnp.arange(L)[None, :] < x_lens[:, None]
    att = jnp.where(mask[:, :, None], att, -1e9)
    p = jax.nn.softmax(att, axis=1)
    o1 = jnp.sum(o * p, axis=1)
    o2 = jnp.max(o, axis=1)
    oc = jnp.concatenate([o1, o2], axis=-1)
    h = oc @ params["w_lin"] + params["b_lin"]
    h = jnp.maximum(h, 0.0)
    return (params["g_lin"] * (h - params["m_lin"]) / jnp.sqrt(params["v_lin"] + EPS)
            + params["bt_lin"])


# ----------------------------------------------------------------------------
# Deterministic synthetic parameter init
# (depthwise weights stored as [K, E]; pointwise / linear weights pre-transposed)
# ----------------------------------------------------------------------------
def init_params(key, E, K, M):
    ks = jax.random.split(key, 18)
    n = lambda k, shape, s=0.1: s * jax.random.normal(k, shape, jnp.float32)
    return dict(
        wdw_f=n(ks[0], (K, E)), wpw_f=n(ks[1], (E, E)),
        gf=1.0 + n(ks[2], (1, E)), bf=n(ks[3], (1, E)),
        mf=n(ks[4], (1, E)), vf=1.0 + jnp.abs(n(ks[5], (1, E))),
        wdw_a=n(ks[6], (K, E)), wpw_a=n(ks[7], (E, E)),
        ga=1.0 + n(ks[8], (1, E)), ba=n(ks[9], (1, E)),
        ma=n(ks[10], (1, E)), va=1.0 + jnp.abs(n(ks[11], (1, E))),
        w_lin=n(ks[12], (2 * E, M)), b_lin=n(ks[13], (1, M)),
        g_lin=1.0 + n(ks[14], (1, M)), bt_lin=n(ks[15], (1, M)),
        m_lin=n(ks[16], (1, M)), v_lin=1.0 + jnp.abs(n(ks[17], (1, M))),
    )


if __name__ == "__main__":
    root = jax.random.PRNGKey(0)

    def run_case(key, B, L, E, K, M, lens_list):
        kx, kp = jax.random.split(key)
        x = jax.random.normal(kx, (B, 1, L, E), jnp.float32)
        x_lens = jnp.array(lens_list, dtype=jnp.int32)
        params = init_params(kp, E, K, M)
        out = jax.block_until_ready(light_attention_forward(x, x_lens, params))
        ref = reference_forward(x, x_lens, params)
        if not np.allclose(np.asarray(out), np.asarray(ref), rtol=2e-2, atol=2e-2):
            raise AssertionError(
                f"Pallas kernel output does not match JAX reference (E={E})")

    k1, k2 = jax.random.split(root)
    # packed-path config (2E <= 128): batch=2, seq_len=16, embeddings_dim=32,
    # kernel_size=7, final_mlp_dim=16
    run_case(k1, 2, 16, 32, 7, 16, [11, 16])
    # split-path config (lane-aligned E): exercises the two-matmul path too
    run_case(k2, 2, 16, 128, 7, 16, [5, 16])

    print("KERNEL_OK")
</pallas_src>

<mosaic_0001>
module attributes {stable_mosaic.version = 11 : i64} {
  func.func @la_kernel_packed(%arg0: i32, %arg1: memref<1x16x32xf32, #tpu.memory_space<vmem>>, %arg2: memref<1x1x32xi32, #tpu.memory_space<vmem>>, %arg3: memref<7x64xf32, #tpu.memory_space<vmem>>, %arg4: memref<64x64xbf16, #tpu.memory_space<vmem>>, %arg5: memref<1x64xf32, #tpu.memory_space<vmem>>, %arg6: memref<1x64xf32, #tpu.memory_space<vmem>>, %arg7: memref<64x128xbf16, #tpu.memory_space<vmem>>, %arg8: memref<1x128xf32, #tpu.memory_space<vmem>>, %arg9: memref<1x128xf32, #tpu.memory_space<vmem>>, %arg10: memref<1x128xf32, #tpu.memory_space<vmem>>, %arg11: memref<1x1x128xf32, #tpu.memory_space<vmem>>) attributes {dimension_semantics = [#tpu.dimension_semantics<parallel>], iteration_bounds = array<i64: 2>, scalar_prefetch = 0 : i64, scratch_operands = 0 : i64, tpu.core_type = #tpu.core_type<tc>, window_params = [{transform_indices = @transform_0, window_bounds = array<i64: 1, 16, 32>}, {transform_indices = @transform_1, window_bounds = array<i64: 1, 1, 32>}, {pipeline_mode = #tpu.pipeline_mode<synchronous>, transform_indices = @transform_2, window_bounds = array<i64: 7, 64>}, {pipeline_mode = #tpu.pipeline_mode<synchronous>, transform_indices = @transform_3, window_bounds = array<i64: 64, 64>}, {pipeline_mode = #tpu.pipeline_mode<synchronous>, transform_indices = @transform_4, window_bounds = array<i64: 1, 64>}, {pipeline_mode = #tpu.pipeline_mode<synchronous>, transform_indices = @transform_5, window_bounds = array<i64: 1, 64>}, {pipeline_mode = #tpu.pipeline_mode<synchronous>, transform_indices = @transform_6, window_bounds = array<i64: 64, 128>}, {pipeline_mode = #tpu.pipeline_mode<synchronous>, transform_indices = @transform_7, window_bounds = array<i64: 1, 128>}, {pipeline_mode = #tpu.pipeline_mode<synchronous>, transform_indices = @transform_8, window_bounds = array<i64: 1, 128>}, {pipeline_mode = #tpu.pipeline_mode<synchronous>, transform_indices = @transform_9, window_bounds = array<i64: 1, 128>}, {transform_indices = @transform_10, window_bounds = array<i64: 1, 1, 128>}]} {
    %c0 = arith.constant 0 : index
    %c0_0 = arith.constant 0 : index
    %c0_1 = arith.constant 0 : index
    %0 = vector.load %arg1[%c0, %c0_0, %c0_1] : memref<1x16x32xf32, #tpu.memory_space<vmem>>, vector<1x16x32xf32>
    %cst = arith.constant 0.000000e+00 : f32
    %1 = vector.broadcast %cst : f32 to vector<1x3x32xf32>
    %2 = tpu.concatenate %1, %0, %1 in 1 : vector<1x3x32xf32>, vector<1x16x32xf32>, vector<1x3x32xf32> -> vector<1x22x32xf32>
    %3 = tpu.concatenate %2, %2 in 2 : vector<1x22x32xf32>, vector<1x22x32xf32> -> vector<1x22x64xf32>
    %cst_2 = arith.constant 0.000000e+00 : f32
    %4 = vector.broadcast %cst_2 : f32 to vector<1x16x64xf32>
    %5 = vector.extract_strided_slice %3 {offsets = [0, 0, 0], sizes = [1, 16, 64], strides = [1, 1, 1]} : vector<1x22x64xf32> to vector<1x16x64xf32>
    %c0_3 = arith.constant 0 : index
    %c0_4 = arith.constant 0 : index
    %6 = vector.load %arg3[%c0_3, %c0_4] : memref<7x64xf32, #tpu.memory_space<vmem>>, vector<1x64xf32>
    %7 = vector.shape_cast %6 : vector<1x64xf32> to vector<1x1x64xf32>
    %8 = vector.broadcast %7 : vector<1x1x64xf32> to vector<1x16x64xf32>
    %9 = arith.mulf %5, %8 : vector<1x16x64xf32>
    %10 = arith.addf %4, %9 : vector<1x16x64xf32>
    %11 = vector.extract_strided_slice %3 {offsets = [0, 1, 0], sizes = [1, 16, 64], strides = [1, 1, 1]} : vector<1x22x64xf32> to vector<1x16x64xf32>
    %c1 = arith.constant 1 : index
    %c0_5 = arith.constant 0 : index
    %12 = vector.load %arg3[%c1, %c0_5] : memref<7x64xf32, #tpu.memory_space<vmem>>, vector<1x64xf32>
    %13 = vector.shape_cast %12 : vector<1x64xf32> to vector<1x1x64xf32>
    %14 = vector.broadcast %13 : vector<1x1x64xf32> to vector<1x16x64xf32>
    %15 = arith.mulf %11, %14 : vector<1x16x64xf32>
    %16 = arith.addf %10, %15 : vector<1x16x64xf32>
    %17 = vector.extract_strided_slice %3 {offsets = [0, 2, 0], sizes = [1, 16, 64], strides = [1, 1, 1]} : vector<1x22x64xf32> to vector<1x16x64xf32>
    %c2 = arith.constant 2 : index
    %c0_6 = arith.constant 0 : index
    %18 = vector.load %arg3[%c2, %c0_6] : memref<7x64xf32, #tpu.memory_space<vmem>>, vector<1x64xf32>
    %19 = vector.shape_cast %18 : vector<1x64xf32> to vector<1x1x64xf32>
    %20 = vector.broadcast %19 : vector<1x1x64xf32> to vector<1x16x64xf32>
    %21 = arith.mulf %17, %20 : vector<1x16x64xf32>
    %22 = arith.addf %16, %21 : vector<1x16x64xf32>
    %23 = vector.extract_strided_slice %3 {offsets = [0, 3, 0], sizes = [1, 16, 64], strides = [1, 1, 1]} : vector<1x22x64xf32> to vector<1x16x64xf32>
    %c3 = arith.constant 3 : index
    %c0_7 = arith.constant 0 : index
    %24 = vector.load %arg3[%c3, %c0_7] : memref<7x64xf32, #tpu.memory_space<vmem>>, vector<1x64xf32>
    %25 = vector.shape_cast %24 : vector<1x64xf32> to vector<1x1x64xf32>
    %26 = vector.broadcast %25 : vector<1x1x64xf32> to vector<1x16x64xf32>
    %27 = arith.mulf %23, %26 : vector<1x16x64xf32>
    %28 = arith.addf %22, %27 : vector<1x16x64xf32>
    %29 = vector.extract_strided_slice %3 {offsets = [0, 4, 0], sizes = [1, 16, 64], strides = [1, 1, 1]} : vector<1x22x64xf32> to vector<1x16x64xf32>
    %c4 = arith.constant 4 : index
    %c0_8 = arith.constant 0 : index
    %30 = vector.load %arg3[%c4, %c0_8] : memref<7x64xf32, #tpu.memory_space<vmem>>, vector<1x64xf32>
    %31 = vector.shape_cast %30 : vector<1x64xf32> to vector<1x1x64xf32>
    %32 = vector.broadcast %31 : vector<1x1x64xf32> to vector<1x16x64xf32>
    %33 = arith.mulf %29, %32 : vector<1x16x64xf32>
    %34 = arith.addf %28, %33 : vector<1x16x64xf32>
    %35 = vector.extract_strided_slice %3 {offsets = [0, 5, 0], sizes = [1, 16, 64], strides = [1, 1, 1]} : vector<1x22x64xf32> to vector<1x16x64xf32>
    %c5 = arith.constant 5 : index
    %c0_9 = arith.constant 0 : index
    %36 = vector.load %arg3[%c5, %c0_9] : memref<7x64xf32, #tpu.memory_space<vmem>>, vector<1x64xf32>
    %37 = vector.shape_cast %36 : vector<1x64xf32> to vector<1x1x64xf32>
    %38 = vector.broadcast %37 : vector<1x1x64xf32> to vector<1x16x64xf32>
    %39 = arith.mulf %35, %38 : vector<1x16x64xf32>
    %40 = arith.addf %34, %39 : vector<1x16x64xf32>
    %41 = vector.extract_strided_slice %3 {offsets = [0, 6, 0], sizes = [1, 16, 64], strides = [1, 1, 1]} : vector<1x22x64xf32> to vector<1x16x64xf32>
    %c6 = arith.constant 6 : index
    %c0_10 = arith.constant 0 : index
    %42 = vector.load %arg3[%c6, %c0_10] : memref<7x64xf32, #tpu.memory_space<vmem>>, vector<1x64xf32>
    %43 = vector.shape_cast %42 : vector<1x64xf32> to vector<1x1x64xf32>
    %44 = vector.broadcast %43 : vector<1x1x64xf32> to vector<1x16x64xf32>
    %45 = arith.mulf %41, %44 : vector<1x16x64xf32>
    %46 = arith.addf %40, %45 : vector<1x16x64xf32>
    %47 = vector.shape_cast %46 : vector<1x16x64xf32> to vector<16x64xf32>
    %48 = arith.truncf %47 : vector<16x64xf32> to vector<16x64xbf16>
    %c0_11 = arith.constant 0 : index
    %c0_12 = arith.constant 0 : index
    %49 = vector.load %arg4[%c0_11, %c0_12] : memref<64x64xbf16, #tpu.memory_space<vmem>>, vector<64x64xbf16>
    %cst_13 = arith.constant dense<0.000000e+00> : vector<16x64xf32>
    %50 = tpu.matmul %48, %49, %cst_13 {dimension_numbers = #tpu.dot_dimension_numbers<[1], [0], [0], [1], [0, 0, 1, 1], [], []>} : vector<16x64xbf16>, vector<64x64xbf16>, vector<16x64xf32> -> vector<16x64xf32>
    %cst_14 = arith.constant 0.000000e+00 : f32
    %51 = vector.broadcast %cst_14 : f32 to vector<16x64xf32>
    %52 = arith.maximumf %50, %51 : vector<16x64xf32>
    %c0_15 = arith.constant 0 : index
    %c0_16 = arith.constant 0 : index
    %53 = vector.load %arg5[%c0_15, %c0_16] : memref<1x64xf32, #tpu.memory_space<vmem>>, vector<1x64xf32>
    %54 = vector.broadcast %53 : vector<1x64xf32> to vector<16x64xf32>
    %55 = arith.mulf %52, %54 : vector<16x64xf32>
    %c0_17 = arith.constant 0 : index
    %c0_18 = arith.constant 0 : index
    %56 = vector.load %arg6[%c0_17, %c0_18] : memref<1x64xf32, #tpu.memory_space<vmem>>, vector<1x64xf32>
    %57 = vector.broadcast %56 : vector<1x64xf32> to vector<16x64xf32>
    %58 = arith.addf %55, %57 : vector<16x64xf32>
    %59 = vector.shape_cast %58 : vector<16x64xf32> to vector<1x16x64xf32>
    %60 = vector.extract_strided_slice %59 {offsets = [0, 0, 0], sizes = [1, 16, 32], strides = [1, 1, 1]} : vector<1x16x64xf32> to vector<1x16x32xf32>
    %61 = vector.extract_strided_slice %59 {offsets = [0, 0, 32], sizes = [1, 16, 32], strides = [1, 1, 1]} : vector<1x16x64xf32> to vector<1x16x32xf32>
    %62 = tpu.iota {dimensions = array<i32: 1>} : vector<1x16x32xi32>
    %c0_19 = arith.constant 0 : index
    %c0_20 = arith.constant 0 : index
    %c0_21 = arith.constant 0 : index
    %63 = vector.load %arg2[%c0_19, %c0_20, %c0_21] : memref<1x1x32xi32, #tpu.memory_space<vmem>>, vector<1x1x32xi32>
    %64 = vector.broadcast %63 : vector<1x1x32xi32> to vector<1x16x32xi32>
    %65 = arith.cmpi slt, %62, %64 : vector<1x16x32xi32>
    %cst_22 = arith.constant -1.000000e+09 : f32
    %66 = vector.broadcast %cst_22 : f32 to vector<1x16x32xf32>
    %67 = arith.select %65, %61, %66 : vector<1x16x32xi1>, vector<1x16x32xf32>
    %cst_23 = arith.constant dense<0xFF800000> : vector<1x32xf32>
    %68 = vector.multi_reduction <maximumf>, %67, %cst_23 [1] : vector<1x16x32xf32> to vector<1x32xf32>
    %69 = vector.shape_cast %68 : vector<1x32xf32> to vector<1x1x32xf32>
    %70 = vector.broadcast %69 : vector<1x1x32xf32> to vector<1x16x32xf32>
    %71 = arith.subf %67, %70 : vector<1x16x32xf32>
    %72 = math.exp %71 : vector<1x16x32xf32>
    %cst_24 = arith.constant dense<0.000000e+00> : vector<1x32xf32>
    %73 = vector.multi_reduction <add>, %72, %cst_24 [1] : vector<1x16x32xf32> to vector<1x32xf32>
    %74 = vector.shape_cast %73 : vector<1x32xf32> to vector<1x1x32xf32>
    %75 = tpu.reciprocal %74 {approx = true} : vector<1x1x32xf32> -> vector<1x1x32xf32>
    %76 = vector.broadcast %75 : vector<1x1x32xf32> to vector<1x16x32xf32>
    %77 = arith.mulf %72, %76 : vector<1x16x32xf32>
    %78 = arith.mulf %60, %77 : vector<1x16x32xf32>
    %cst_25 = arith.constant dense<0.000000e+00> : vector<1x32xf32>
    %79 = vector.multi_reduction <add>, %78, %cst_25 [1] : vector<1x16x32xf32> to vector<1x32xf32>
    %cst_26 = arith.constant dense<0xFF800000> : vector<1x32xf32>
    %80 = vector.multi_reduction <maximumf>, %60, %cst_26 [1] : vector<1x16x32xf32> to vector<1x32xf32>
    %81 = tpu.concatenate %79, %80 in 1 : vector<1x32xf32>, vector<1x32xf32> -> vector<1x64xf32>
    %82 = arith.truncf %81 : vector<1x64xf32> to vector<1x64xbf16>
    %c0_27 = arith.constant 0 : index
    %c0_28 = arith.constant 0 : index
    %83 = vector.load %arg7[%c0_27, %c0_28] : memref<64x128xbf16, #tpu.memory_space<vmem>>, vector<64x128xbf16>
    %cst_29 = arith.constant dense<0.000000e+00> : vector<1x128xf32>
    %84 = tpu.matmul %82, %83, %cst_29 {dimension_numbers = #tpu.dot_dimension_numbers<[1], [0], [0], [1], [0, 0, 1, 1], [], []>} : vector<1x64xbf16>, vector<64x128xbf16>, vector<1x128xf32> -> vector<1x128xf32>
    %c0_30 = arith.constant 0 : index
    %c0_31 = arith.constant 0 : index
    %85 = vector.load %arg8[%c0_30, %c0_31] : memref<1x128xf32, #tpu.memory_space<vmem>>, vector<1x128xf32>
    %86 = arith.addf %84, %85 : vector<1x128xf32>
    %cst_32 = arith.constant 0.000000e+00 : f32
    %87 = vector.broadcast %cst_32 : f32 to vector<1x128xf32>
    %88 = arith.maximumf %86, %87 : vector<1x128xf32>
    %c0_33 = arith.constant 0 : index
    %c0_34 = arith.constant 0 : index
    %89 = vector.load %arg9[%c0_33, %c0_34] : memref<1x128xf32, #tpu.memory_space<vmem>>, vector<1x128xf32>
    %90 = arith.mulf %88, %89 : vector<1x128xf32>
    %c0_35 = arith.constant 0 : index
    %c0_36 = arith.constant 0 : index
    %91 = vector.load %arg10[%c0_35, %c0_36] : memref<1x128xf32, #tpu.memory_space<vmem>>, vector<1x128xf32>
    %92 = arith.addf %90, %91 : vector<1x128xf32>
    %c0_37 = arith.constant 0 : index
    %c0_38 = arith.constant 0 : index
    %c0_39 = arith.constant 0 : index
    %93 = vector.load %arg11[%c0_37, %c0_38, %c0_39] : memref<1x1x128xf32, #tpu.memory_space<vmem>>, vector<1x1x128xf32>
    %94 = vector.shape_cast %93 : vector<1x1x128xf32> to vector<1x128xf32>
    %95 = vector.shape_cast %92 : vector<1x128xf32> to vector<1x1x128xf32>
    tpu.vector_store %arg11[%c0_37, %c0_38, %c0_39], %95 {strides = array<i32>} : memref<1x1x128xf32, #tpu.memory_space<vmem>>, vector<1x1x128xf32>,
    return
  }
  func.func @transform_0(%arg0: i32) -> (i32, i32, i32) {
    %c0_i32 = arith.constant 0 : i32
    %c0_i32_0 = arith.constant 0 : i32
    %c0_i32_1 = arith.constant 0 : i32
    return %arg0, %c0_i32, %c0_i32_0 : i32, i32, i32
  }
  func.func @transform_1(%arg0: i32) -> (i32, i32, i32) {
    %c0_i32 = arith.constant 0 : i32
    %c0_i32_0 = arith.constant 0 : i32
    %c0_i32_1 = arith.constant 0 : i32
    return %arg0, %c0_i32, %c0_i32_0 : i32, i32, i32
  }
  func.func @transform_2(%arg0: i32) -> (i32, i32) {
    %c0_i32 = arith.constant 0 : i32
    %c0_i32_0 = arith.constant 0 : i32
    %c0_i32_1 = arith.constant 0 : i32
    return %c0_i32, %c0_i32_0 : i32, i32
  }
  func.func @transform_3(%arg0: i32) -> (i32, i32) {
    %c0_i32 = arith.constant 0 : i32
    %c0_i32_0 = arith.constant 0 : i32
    %c0_i32_1 = arith.constant 0 : i32
    return %c0_i32, %c0_i32_0 : i32, i32
  }
  func.func @transform_4(%arg0: i32) -> (i32, i32) {
    %c0_i32 = arith.constant 0 : i32
    %c0_i32_0 = arith.constant 0 : i32
    %c0_i32_1 = arith.constant 0 : i32
    return %c0_i32, %c0_i32_0 : i32, i32
  }
  func.func @transform_5(%arg0: i32) -> (i32, i32) {
    %c0_i32 = arith.constant 0 : i32
    %c0_i32_0 = arith.constant 0 : i32
    %c0_i32_1 = arith.constant 0 : i32
    return %c0_i32, %c0_i32_0 : i32, i32
  }
  func.func @transform_6(%arg0: i32) -> (i32, i32) {
    %c0_i32 = arith.constant 0 : i32
    %c0_i32_0 = arith.constant 0 : i32
    %c0_i32_1 = arith.constant 0 : i32
    return %c0_i32, %c0_i32_0 : i32, i32
  }
  func.func @transform_7(%arg0: i32) -> (i32, i32) {
    %c0_i32 = arith.constant 0 : i32
    %c0_i32_0 = arith.constant 0 : i32
    %c0_i32_1 = arith.constant 0 : i32
    return %c0_i32, %c0_i32_0 : i32, i32
  }
  func.func @transform_8(%arg0: i32) -> (i32, i32) {
    %c0_i32 = arith.constant 0 : i32
    %c0_i32_0 = arith.constant 0 : i32
    %c0_i32_1 = arith.constant 0 : i32
    return %c0_i32, %c0_i32_0 : i32, i32
  }
  func.func @transform_9(%arg0: i32) -> (i32, i32) {
    %c0_i32 = arith.constant 0 : i32
    %c0_i32_0 = arith.constant 0 : i32
    %c0_i32_1 = arith.constant 0 : i32
    return %c0_i32, %c0_i32_0 : i32, i32
  }
  func.func @transform_10(%arg0: i32) -> (i32, i32, i32) {
    %c0_i32 = arith.constant 0 : i32
    %c0_i32_0 = arith.constant 0 : i32
    %c0_i32_1 = arith.constant 0 : i32
    return %arg0, %c0_i32, %c0_i32_0 : i32, i32, i32
  }
}

module attributes {stable_mosaic.version = 11 : i64} {
  func.func @la_kernel_packed(%arg0: i32, %arg1: memref<1x16x32xf32, #tpu.memory_space<vmem>>, %arg2: memref<1x1x32xi32, #tpu.memory_space<vmem>>, %arg3: memref<7x64xf32, #tpu.memory_space<vmem>>, %arg4: memref<64x64xbf16, #tpu.memory_space<vmem>>, %arg5: memref<1x64xf32, #tpu.memory_space<vmem>>, %arg6: memref<1x64xf32, #tpu.memory_space<vmem>>, %arg7: memref<64x128xbf16, #tpu.memory_space<vmem>>, %arg8: memref<1x128xf32, #tpu.memory_space<vmem>>, %arg9: memref<1x128xf32, #tpu.memory_space<vmem>>, %arg10: memref<1x128xf32, #tpu.memory_space<vmem>>, %arg11: memref<1x1x128xf32, #tpu.memory_space<vmem>>) attributes {dimension_semantics = [#tpu.dimension_semantics<parallel>], iteration_bounds = array<i64: 2>, scalar_prefetch = 0 : i64, scratch_operands = 0 : i64, tpu.core_type = #tpu.core_type<tc>, window_params = [{transform_indices = @transform_0, window_bounds = array<i64: 1, 16, 32>}, {transform_indices = @transform_1, window_bounds = array<i64: 1, 1, 32>}, {pipeline_mode = #tpu.pipeline_mode<synchronous>, transform_indices = @transform_2, window_bounds = array<i64: 7, 64>}, {pipeline_mode = #tpu.pipeline_mode<synchronous>, transform_indices = @transform_3, window_bounds = array<i64: 64, 64>}, {pipeline_mode = #tpu.pipeline_mode<synchronous>, transform_indices = @transform_4, window_bounds = array<i64: 1, 64>}, {pipeline_mode = #tpu.pipeline_mode<synchronous>, transform_indices = @transform_5, window_bounds = array<i64: 1, 64>}, {pipeline_mode = #tpu.pipeline_mode<synchronous>, transform_indices = @transform_6, window_bounds = array<i64: 64, 128>}, {pipeline_mode = #tpu.pipeline_mode<synchronous>, transform_indices = @transform_7, window_bounds = array<i64: 1, 128>}, {pipeline_mode = #tpu.pipeline_mode<synchronous>, transform_indices = @transform_8, window_bounds = array<i64: 1, 128>}, {pipeline_mode = #tpu.pipeline_mode<synchronous>, transform_indices = @transform_9, window_bounds = array<i64: 1, 128>}, {transform_indices = @transform_10, window_bounds = array<i64: 1, 1, 128>}]} {
    %c0 = arith.constant 0 : index
    %c0_0 = arith.constant 0 : index
    %c0_1 = arith.constant 0 : index
    %0 = vector.load %arg1[%c0, %c0_0, %c0_1] : memref<1x16x32xf32, #tpu.memory_space<vmem>>, vector<1x16x32xf32>
    %cst = arith.constant 0.000000e+00 : f32
    %1 = vector.broadcast %cst : f32 to vector<1x3x32xf32>
    %2 = tpu.concatenate %1, %0, %1 in 1 : vector<1x3x32xf32>, vector<1x16x32xf32>, vector<1x3x32xf32> -> vector<1x22x32xf32>
    %3 = tpu.concatenate %2, %2 in 2 : vector<1x22x32xf32>, vector<1x22x32xf32> -> vector<1x22x64xf32>
    %cst_2 = arith.constant 0.000000e+00 : f32
    %4 = vector.broadcast %cst_2 : f32 to vector<1x16x64xf32>
    %5 = vector.extract_strided_slice %3 {offsets = [0, 0, 0], sizes = [1, 16, 64], strides = [1, 1, 1]} : vector<1x22x64xf32> to vector<1x16x64xf32>
    %c0_3 = arith.constant 0 : index
    %c0_4 = arith.constant 0 : index
    %6 = vector.load %arg3[%c0_3, %c0_4] : memref<7x64xf32, #tpu.memory_space<vmem>>, vector<1x64xf32>
    %7 = vector.shape_cast %6 : vector<1x64xf32> to vector<1x1x64xf32>
    %8 = vector.broadcast %7 : vector<1x1x64xf32> to vector<1x16x64xf32>
    %9 = arith.mulf %5, %8 : vector<1x16x64xf32>
    %10 = arith.addf %4, %9 : vector<1x16x64xf32>
    %11 = vector.extract_strided_slice %3 {offsets = [0, 1, 0], sizes = [1, 16, 64], strides = [1, 1, 1]} : vector<1x22x64xf32> to vector<1x16x64xf32>
    %c1 = arith.constant 1 : index
    %c0_5 = arith.constant 0 : index
    %12 = vector.load %arg3[%c1, %c0_5] : memref<7x64xf32, #tpu.memory_space<vmem>>, vector<1x64xf32>
    %13 = vector.shape_cast %12 : vector<1x64xf32> to vector<1x1x64xf32>
    %14 = vector.broadcast %13 : vector<1x1x64xf32> to vector<1x16x64xf32>
    %15 = arith.mulf %11, %14 : vector<1x16x64xf32>
    %16 = arith.addf %10, %15 : vector<1x16x64xf32>
    %17 = vector.extract_strided_slice %3 {offsets = [0, 2, 0], sizes = [1, 16, 64], strides = [1, 1, 1]} : vector<1x22x64xf32> to vector<1x16x64xf32>
    %c2 = arith.constant 2 : index
    %c0_6 = arith.constant 0 : index
    %18 = vector.load %arg3[%c2, %c0_6] : memref<7x64xf32, #tpu.memory_space<vmem>>, vector<1x64xf32>
    %19 = vector.shape_cast %18 : vector<1x64xf32> to vector<1x1x64xf32>
    %20 = vector.broadcast %19 : vector<1x1x64xf32> to vector<1x16x64xf32>
    %21 = arith.mulf %17, %20 : vector<1x16x64xf32>
    %22 = arith.addf %16, %21 : vector<1x16x64xf32>
    %23 = vector.extract_strided_slice %3 {offsets = [0, 3, 0], sizes = [1, 16, 64], strides = [1, 1, 1]} : vector<1x22x64xf32> to vector<1x16x64xf32>
    %c3 = arith.constant 3 : index
    %c0_7 = arith.constant 0 : index
    %24 = vector.load %arg3[%c3, %c0_7] : memref<7x64xf32, #tpu.memory_space<vmem>>, vector<1x64xf32>
    %25 = vector.shape_cast %24 : vector<1x64xf32> to vector<1x1x64xf32>
    %26 = vector.broadcast %25 : vector<1x1x64xf32> to vector<1x16x64xf32>
    %27 = arith.mulf %23, %26 : vector<1x16x64xf32>
    %28 = arith.addf %22, %27 : vector<1x16x64xf32>
    %29 = vector.extract_strided_slice %3 {offsets = [0, 4, 0], sizes = [1, 16, 64], strides = [1, 1, 1]} : vector<1x22x64xf32> to vector<1x16x64xf32>
    %c4 = arith.constant 4 : index
    %c0_8 = arith.constant 0 : index
    %30 = vector.load %arg3[%c4, %c0_8] : memref<7x64xf32, #tpu.memory_space<vmem>>, vector<1x64xf32>
    %31 = vector.shape_cast %30 : vector<1x64xf32> to vector<1x1x64xf32>
    %32 = vector.broadcast %31 : vector<1x1x64xf32> to vector<1x16x64xf32>
    %33 = arith.mulf %29, %32 : vector<1x16x64xf32>
    %34 = arith.addf %28, %33 : vector<1x16x64xf32>
    %35 = vector.extract_strided_slice %3 {offsets = [0, 5, 0], sizes = [1, 16, 64], strides = [1, 1, 1]} : vector<1x22x64xf32> to vector<1x16x64xf32>
    %c5 = arith.constant 5 : index
    %c0_9 = arith.constant 0 : index
    %36 = vector.load %arg3[%c5, %c0_9] : memref<7x64xf32, #tpu.memory_space<vmem>>, vector<1x64xf32>
    %37 = vector.shape_cast %36 : vector<1x64xf32> to vector<1x1x64xf32>
    %38 = vector.broadcast %37 : vector<1x1x64xf32> to vector<1x16x64xf32>
    %39 = arith.mulf %35, %38 : vector<1x16x64xf32>
    %40 = arith.addf %34, %39 : vector<1x16x64xf32>
    %41 = vector.extract_strided_slice %3 {offsets = [0, 6, 0], sizes = [1, 16, 64], strides = [1, 1, 1]} : vector<1x22x64xf32> to vector<1x16x64xf32>
    %c6 = arith.constant 6 : index
    %c0_10 = arith.constant 0 : index
    %42 = vector.load %arg3[%c6, %c0_10] : memref<7x64xf32, #tpu.memory_space<vmem>>, vector<1x64xf32>
    %43 = vector.shape_cast %42 : vector<1x64xf32> to vector<1x1x64xf32>
    %44 = vector.broadcast %43 : vector<1x1x64xf32> to vector<1x16x64xf32>
    %45 = arith.mulf %41, %44 : vector<1x16x64xf32>
    %46 = arith.addf %40, %45 : vector<1x16x64xf32>
    %47 = vector.shape_cast %46 : vector<1x16x64xf32> to vector<16x64xf32>
    %48 = arith.truncf %47 : vector<16x64xf32> to vector<16x64xbf16>
    %c0_11 = arith.constant 0 : index
    %c0_12 = arith.constant 0 : index
    %49 = vector.load %arg4[%c0_11, %c0_12] : memref<64x64xbf16, #tpu.memory_space<vmem>>, vector<64x64xbf16>
    %cst_13 = arith.constant dense<0.000000e+00> : vector<16x64xf32>
    %50 = tpu.matmul %48, %49, %cst_13 {dimension_numbers = #tpu.dot_dimension_numbers<[1], [0], [0], [1], [0, 0, 1, 1], [], []>} : vector<16x64xbf16>, vector<64x64xbf16>, vector<16x64xf32> -> vector<16x64xf32>
    %cst_14 = arith.constant 0.000000e+00 : f32
    %51 = vector.broadcast %cst_14 : f32 to vector<16x64xf32>
    %52 = arith.maximumf %50, %51 : vector<16x64xf32>
    %c0_15 = arith.constant 0 : index
    %c0_16 = arith.constant 0 : index
    %53 = vector.load %arg5[%c0_15, %c0_16] : memref<1x64xf32, #tpu.memory_space<vmem>>, vector<1x64xf32>
    %54 = vector.broadcast %53 : vector<1x64xf32> to vector<16x64xf32>
    %55 = arith.mulf %52, %54 : vector<16x64xf32>
    %c0_17 = arith.constant 0 : index
    %c0_18 = arith.constant 0 : index
    %56 = vector.load %arg6[%c0_17, %c0_18] : memref<1x64xf32, #tpu.memory_space<vmem>>, vector<1x64xf32>
    %57 = vector.broadcast %56 : vector<1x64xf32> to vector<16x64xf32>
    %58 = arith.addf %55, %57 : vector<16x64xf32>
    %59 = vector.shape_cast %58 : vector<16x64xf32> to vector<1x16x64xf32>
    %60 = vector.extract_strided_slice %59 {offsets = [0, 0, 0], sizes = [1, 16, 32], strides = [1, 1, 1]} : vector<1x16x64xf32> to vector<1x16x32xf32>
    %61 = vector.extract_strided_slice %59 {offsets = [0, 0, 32], sizes = [1, 16, 32], strides = [1, 1, 1]} : vector<1x16x64xf32> to vector<1x16x32xf32>
    %62 = tpu.iota {dimensions = array<i32: 1>} : vector<1x16x32xi32>
    %c0_19 = arith.constant 0 : index
    %c0_20 = arith.constant 0 : index
    %c0_21 = arith.constant 0 : index
    %63 = vector.load %arg2[%c0_19, %c0_20, %c0_21] : memref<1x1x32xi32, #tpu.memory_space<vmem>>, vector<1x1x32xi32>
    %64 = vector.broadcast %63 : vector<1x1x32xi32> to vector<1x16x32xi32>
    %65 = arith.cmpi slt, %62, %64 : vector<1x16x32xi32>
    %cst_22 = arith.constant -1.000000e+09 : f32
    %66 = vector.broadcast %cst_22 : f32 to vector<1x16x32xf32>
    %67 = arith.select %65, %61, %66 : vector<1x16x32xi1>, vector<1x16x32xf32>
    %cst_23 = arith.constant dense<0xFF800000> : vector<1x32xf32>
    %68 = vector.multi_reduction <maximumf>, %67, %cst_23 [1] : vector<1x16x32xf32> to vector<1x32xf32>
    %69 = vector.shape_cast %68 : vector<1x32xf32> to vector<1x1x32xf32>
    %70 = vector.broadcast %69 : vector<1x1x32xf32> to vector<1x16x32xf32>
    %71 = arith.subf %67, %70 : vector<1x16x32xf32>
    %72 = math.exp %71 : vector<1x16x32xf32>
    %cst_24 = arith.constant dense<0.000000e+00> : vector<1x32xf32>
    %73 = vector.multi_reduction <add>, %72, %cst_24 [1] : vector<1x16x32xf32> to vector<1x32xf32>
    %74 = vector.shape_cast %73 : vector<1x32xf32> to vector<1x1x32xf32>
    %75 = tpu.reciprocal %74 {approx = true} : vector<1x1x32xf32> -> vector<1x1x32xf32>
    %76 = vector.broadcast %75 : vector<1x1x32xf32> to vector<1x16x32xf32>
    %77 = arith.mulf %72, %76 : vector<1x16x32xf32>
    %78 = arith.mulf %60, %77 : vector<1x16x32xf32>
    %cst_25 = arith.constant dense<0.000000e+00> : vector<1x32xf32>
    %79 = vector.multi_reduction <add>, %78, %cst_25 [1] : vector<1x16x32xf32> to vector<1x32xf32>
    %cst_26 = arith.constant dense<0xFF800000> : vector<1x32xf32>
    %80 = vector.multi_reduction <maximumf>, %60, %cst_26 [1] : vector<1x16x32xf32> to vector<1x32xf32>
    %81 = tpu.concatenate %79, %80 in 1 : vector<1x32xf32>, vector<1x32xf32> -> vector<1x64xf32>
    %82 = arith.truncf %81 : vector<1x64xf32> to vector<1x64xbf16>
    %c0_27 = arith.constant 0 : index
    %c0_28 = arith.constant 0 : index
    %83 = vector.load %arg7[%c0_27, %c0_28] : memref<64x128xbf16, #tpu.memory_space<vmem>>, vector<64x128xbf16>
    %cst_29 = arith.constant dense<0.000000e+00> : vector<1x128xf32>
    %84 = tpu.matmul %82, %83, %cst_29 {dimension_numbers = #tpu.dot_dimension_numbers<[1], [0], [0], [1], [0, 0, 1, 1], [], []>} : vector<1x64xbf16>, vector<64x128xbf16>, vector<1x128xf32> -> vector<1x128xf32>
    %c0_30 = arith.constant 0 : index
    %c0_31 = arith.constant 0 : index
    %85 = vector.load %arg8[%c0_30, %c0_31] : memref<1x128xf32, #tpu.memory_space<vmem>>, vector<1x128xf32>
    %86 = arith.addf %84, %85 : vector<1x128xf32>
    %cst_32 = arith.constant 0.000000e+00 : f32
    %87 = vector.broadcast %cst_32 : f32 to vector<1x128xf32>
    %88 = arith.maximumf %86, %87 : vector<1x128xf32>
    %c0_33 = arith.constant 0 : index
    %c0_34 = arith.constant 0 : index
    %89 = vector.load %arg9[%c0_33, %c0_34] : memref<1x128xf32, #tpu.memory_space<vmem>>, vector<1x128xf32>
    %90 = arith.mulf %88, %89 : vector<1x128xf32>
    %c0_35 = arith.constant 0 : index
    %c0_36 = arith.constant 0 : index
    %91 = vector.load %arg10[%c0_35, %c0_36] : memref<1x128xf32, #tpu.memory_space<vmem>>, vector<1x128xf32>
    %92 = arith.addf %90, %91 : vector<1x128xf32>
    %c0_37 = arith.constant 0 : index
    %c0_38 = arith.constant 0 : index
    %c0_39 = arith.constant 0 : index
    %93 = vector.load %arg11[%c0_37, %c0_38, %c0_39] : memref<1x1x128xf32, #tpu.memory_space<vmem>>, vector<1x1x128xf32>
    %94 = vector.shape_cast %93 : vector<1x1x128xf32> to vector<1x128xf32>
    %95 = vector.shape_cast %92 : vector<1x128xf32> to vector<1x1x128xf32>
    tpu.vector_store %arg11[%c0_37, %c0_38, %c0_39], %95 {strides = array<i32>} : memref<1x1x128xf32, #tpu.memory_space<vmem>>, vector<1x1x128xf32>,
    return
  }
  func.func @transform_0(%arg0: i32) -> (i32, i32, i32) {
    %c0_i32 = arith.constant 0 : i32
    %c0_i32_0 = arith.constant 0 : i32
    %c0_i32_1 = arith.constant 0 : i32
    return %arg0, %c0_i32, %c0_i32_0 : i32, i32, i32
  }
  func.func @transform_1(%arg0: i32) -> (i32, i32, i32) {
    %c0_i32 = arith.constant 0 : i32
    %c0_i32_0 = arith.constant 0 : i32
    %c0_i32_1 = arith.constant 0 : i32
    return %arg0, %c0_i32, %c0_i32_0 : i32, i32, i32
  }
  func.func @transform_2(%arg0: i32) -> (i32, i32) {
    %c0_i32 = arith.constant 0 : i32
    %c0_i32_0 = arith.constant 0 : i32
    %c0_i32_1 = arith.constant 0 : i32
    return %c0_i32, %c0_i32_0 : i32, i32
  }
  func.func @transform_3(%arg0: i32) -> (i32, i32) {
    %c0_i32 = arith.constant 0 : i32
    %c0_i32_0 = arith.constant 0 : i32
    %c0_i32_1 = arith.constant 0 : i32
    return %c0_i32, %c0_i32_0 : i32, i32
  }
  func.func @transform_4(%arg0: i32) -> (i32, i32) {
    %c0_i32 = arith.constant 0 : i32
    %c0_i32_0 = arith.constant 0 : i32
    %c0_i32_1 = arith.constant 0 : i32
    return %c0_i32, %c0_i32_0 : i32, i32
  }
  func.func @transform_5(%arg0: i32) -> (i32, i32) {
    %c0_i32 = arith.constant 0 : i32
    %c0_i32_0 = arith.constant 0 : i32
    %c0_i32_1 = arith.constant 0 : i32
    return %c0_i32, %c0_i32_0 : i32, i32
  }
  func.func @transform_6(%arg0: i32) -> (i32, i32) {
    %c0_i32 = arith.constant 0 : i32
    %c0_i32_0 = arith.constant 0 : i32
    %c0_i32_1 = arith.constant 0 : i32
    return %c0_i32, %c0_i32_0 : i32, i32
  }
  func.func @transform_7(%arg0: i32) -> (i32, i32) {
    %c0_i32 = arith.constant 0 : i32
    %c0_i32_0 = arith.constant 0 : i32
    %c0_i32_1 = arith.constant 0 : i32
    return %c0_i32, %c0_i32_0 : i32, i32
  }
  func.func @transform_8(%arg0: i32) -> (i32, i32) {
    %c0_i32 = arith.constant 0 : i32
    %c0_i32_0 = arith.constant 0 : i32
    %c0_i32_1 = arith.constant 0 : i32
    return %c0_i32, %c0_i32_0 : i32, i32
  }
  func.func @transform_9(%arg0: i32) -> (i32, i32) {
    %c0_i32 = arith.constant 0 : i32
    %c0_i32_0 = arith.constant 0 : i32
    %c0_i32_1 = arith.constant 0 : i32
    return %c0_i32, %c0_i32_0 : i32, i32
  }
  func.func @transform_10(%arg0: i32) -> (i32, i32, i32) {
    %c0_i32 = arith.constant 0 : i32
    %c0_i32_0 = arith.constant 0 : i32
    %c0_i32_1 = arith.constant 0 : i32
    return %arg0, %c0_i32, %c0_i32_0 : i32, i32, i32
  }
}

</mosaic_0001>

<llo_original>
// kernel: tpu_custom_call.1
$region0: #{tpu_custom_call.1}
  #allocation0 [shape = 'u32[]', space=smem, size = 0x4, offset = 0x4, fixed_abs, tag = 'smem constant byte address 0x4 - core index']
  #allocation1 [shape = 'u32[144,128]{1,0:T(1,128)}', space=vmem, size = 0x12000, scoped, tag = 'internal scratch']
  %s0 = inlined_call_operand.hbm [shape: f32[2,16,32], index: 0, kind: input, shape index: {}]
  %s1 = inlined_call_operand.hbm [shape: s32[2,1,32], index: 1, kind: input, shape index: {}]
  %s2 = inlined_call_operand.hbm [shape: f32[7,64], index: 2, kind: input, shape index: {}]
  %s3 = inlined_call_operand.hbm [shape: bf16[64,64], index: 3, kind: input, shape index: {}]
  %s4 = inlined_call_operand.hbm [shape: f32[1,64], index: 4, kind: input, shape index: {}]
  %s5 = inlined_call_operand.hbm [shape: f32[1,64], index: 5, kind: input, shape index: {}]
  %s6 = inlined_call_operand.hbm [shape: bf16[64,128], index: 6, kind: input, shape index: {}]
  %s7 = inlined_call_operand.hbm [shape: f32[1,128], index: 7, kind: input, shape index: {}]
  %s8 = inlined_call_operand.hbm [shape: f32[1,128], index: 8, kind: input, shape index: {}]
  %s9 = inlined_call_operand.hbm [shape: f32[1,128], index: 9, kind: input, shape index: {}]
  %s10 = inlined_call_operand.hbm [shape: f32[2,1,128], index: 10, kind: output, shape index: {}]
  %s11 = sld [smem:[#allocation0]]
  $region113: #{tpu_custom_call.1} parent=0
    _
  %s13 = ssub.s32 1, %s11
  %s14 = scalar_select 0, %s13, %s11
  $region1: #{tpu_custom_call.1} parent=0
    #allocation2 [shape = 'u8[16384]{0}', space=vmem, size = 0x4000, scoped, tag = 'input window, operand 0']
    #allocation3 [shape = 's32[2]{0}', space=sflag, size = 0x8, scoped, tag = 'scoped memory for tpu_custom_call.1']
    #allocation4 [shape = 's32[2]{0}', space=sflag, size = 0x8, scoped, tag = 'scoped memory for tpu_custom_call.1']
    #allocation5 [shape = 'u8[1024]{0}', space=vmem, size = 0x400, scoped, tag = 'input window, operand 1']
    #allocation6 [shape = 's32[2]{0}', space=sflag, size = 0x8, scoped, tag = 'scoped memory for tpu_custom_call.1']
    #allocation7 [shape = 'u8[4096]{0}', space=vmem, size = 0x1000, scoped, tag = 'input window, operand 2, single buffered']
    #allocation8 [shape = 'u8[16384]{0}', space=vmem, size = 0x4000, scoped, tag = 'input window, operand 3, single buffered']
    #allocation9 [shape = 's32[1]{0}', space=sflag, size = 0x4, scoped, tag = 'scoped memory for tpu_custom_call.1']
    #allocation10 [shape = 'u8[512]{0}', space=vmem, size = 0x400, scoped, tag = 'input window, operand 4, single buffered']
    #allocation11 [shape = 'u8[512]{0}', space=vmem, size = 0x400, scoped, tag = 'input window, operand 5, single buffered']
    #allocation12 [shape = 's32[1]{0}', space=sflag, size = 0x4, scoped, tag = 'scoped memory for tpu_custom_call.1']
    #allocation13 [shape = 'u8[16384]{0}', space=vmem, size = 0x4000, scoped, tag = 'input window, operand 6, single buffered']
    #allocation14 [shape = 'u8[512]{0}', space=vmem, size = 0x400, scoped, tag = 'input window, operand 7, single buffered']
    #allocation15 [shape = 's32[1]{0}', space=sflag, size = 0x4, scoped, tag = 'scoped memory for tpu_custom_call.1']
    #allocation16 [shape = 'u8[512]{0}', space=vmem, size = 0x400, scoped, tag = 'input window, operand 8, single buffered']
    #allocation17 [shape = 'u8[512]{0}', space=vmem, size = 0x400, scoped, tag = 'input window, operand 9, single buffered']
    #allocation18 [shape = 's32[1]{0}', space=sflag, size = 0x4, scoped, tag = 'scoped memory for tpu_custom_call.1']
    #allocation19 [shape = 'u8[1024]{0}', space=vmem, size = 0x400, scoped, tag = 'output window, operand 0']
    %15 = vsyncpa [#allocation3], 0
    %s16 = scalar_lea.sflag [#allocation3], 1
    %17 = vsyncpa %s16, 0
    %18 = vsyncpa [#allocation6], 0
    %s19 = scalar_lea.sflag [#allocation6], 1
    %20 = vsyncpa %s19, 0
    %21 = vsyncpa [#allocation9], 0
    %22 = vsyncpa [#allocation12], 0
    %23 = vsyncpa [#allocation15], 0
    %24 = vsyncpa [#allocation18], 0
    %25 = vsyncpa [#allocation4], 0
    %s26 = scalar_lea.sflag [#allocation4], 1
    %27 = vsyncpa %s26, 0
    loop: start=0, step=1, limit=4
    $region2: #{tpu_custom_call.1} parent=1 // loop_pre_header
      _
    $region3: #{tpu_custom_call.1} parent=1 // loop_header
      %s29 = sphi 0, %s33
      %p30 = scmp.ge.s32.totalorder %s29, 4
      %s39 = sphi 0, %s41
      %s42 = sphi 0, %s39
      %s43 = sphi 0, %s42
      %s59 = sphi 0, %s43
      %s65 = sphi 0, %s67
      %s68 = sphi 0, %s65
      %s69 = sphi 0, %s68
      %s85 = sphi 0, %s69
      %s89 = sphi 0, %s89
      %s91 = sphi 0, %s89
      %s92 = sphi 0, %s91
      %s106 = sphi 0, %s92
      %s110 = sphi 0, %s110
      %s112 = sphi 0, %s110
      %s113 = sphi 0, %s112
      %s127 = sphi 0, %s113
      %s131 = sphi 0, %s131
      %s133 = sphi 0, %s131
      %s134 = sphi 0, %s133
      %s148 = sphi 0, %s134
      %s152 = sphi 0, %s152
      %s154 = sphi 0, %s152
      %s155 = sphi 0, %s154
      %s169 = sphi 0, %s155
      %s173 = sphi 0, %s173
      %s175 = sphi 0, %s173
      %s176 = sphi 0, %s175
      %s190 = sphi 0, %s176
      %s194 = sphi 0, %s194
      %s196 = sphi 0, %s194
      %s197 = sphi 0, %s196
      %s211 = sphi 0, %s197
      %s215 = sphi 0, %s215
      %s217 = sphi 0, %s215
      %s218 = sphi 0, %s217
      %s232 = sphi 0, %s218
      %s236 = sphi 0, %s236
      %s238 = sphi 0, %s236
      %s239 = sphi 0, %s238
      %s253 = sphi 0, %s239
      %s259 = sphi 0, %s261
      %s262 = sphi 0, %s259
      %s263 = sphi 0, %s262
      %s279 = sphi 0, %s263
    $region4: #{tpu_custom_call.1} parent=1 // loop_header_branch
      %32 = sbr.rel (%p30) target = $region8
    $region5: #{tpu_custom_call.1} parent=1 // loop_body
      %s34 = ssub.s32 %s29, 1
      %s35 = ssub.s32 %s29, 2
      %s36 = sadd.s32 %s29, 1
      %s37 = ssub.s32 %s29, %s36
      %p38 = scmp.eq.s32.totalorder %s37, 0
      %s40 = sadd.s32 %s39, 1
      %s41 = scalar_select %p38, %s39, %s40
      %p44 = pneg %p38
      %p45 = scmp.eq.s32.totalorder %s29, 1
      %p46 = por %p44, %p45
      %p47 = scmp.ne.s32.totalorder %s39, %s42
      %p48 = scmp.eq.s32.totalorder %s29, 0
      %p49 = por %p47, %p48
      %p50 = scmp.ne.s32.totalorder %s39, %s42
      %p51 = scmp.eq.s32.totalorder %s34, 1
      %p52 = por %p50, %p51
      %p53 = scmp.ne.s32.totalorder %s42, %s43
      %p54 = scmp.eq.s32.totalorder %s34, 0
      %p55 = por %p53, %p54
      %p56 = scmp.ne.s32.totalorder %s42, %s43
      %p57 = scmp.eq.s32.totalorder %s35, 1
      %p58 = por %p56, %p57
      %p60 = scmp.ne.s32.totalorder %s43, %s59
      %p61 = scmp.eq.s32.totalorder %s35, 0
      %p62 = por %p60, %p61
      %s63 = ssub.s32 %s29, %s36
      %p64 = scmp.eq.s32.totalorder %s63, 0
      %s66 = sadd.s32 %s65, 1
      %s67 = scalar_select %p64, %s65, %s66
      %p70 = pneg %p64
      %p71 = scmp.eq.s32.totalorder %s29, 1
      %p72 = por %p70, %p71
      %p73 = scmp.ne.s32.totalorder %s65, %s68
      %p74 = scmp.eq.s32.totalorder %s29, 0
      %p75 = por %p73, %p74
      %p76 = scmp.ne.s32.totalorder %s65, %s68
      %p77 = scmp.eq.s32.totalorder %s34, 1
      %p78 = por %p76, %p77
      %p79 = scmp.ne.s32.totalorder %s68, %s69
      %p80 = scmp.eq.s32.totalorder %s34, 0
      %p81 = por %p79, %p80
      %p82 = scmp.ne.s32.totalorder %s68, %s69
      %p83 = scmp.eq.s32.totalorder %s35, 1
      %p84 = por %p82, %p83
      %p86 = scmp.ne.s32.totalorder %s69, %s85
      %p87 = scmp.eq.s32.totalorder %s35, 0
      %p88 = por %p86, %p87
      %s90 = sadd.s32 %s89, 1
      %p93 = scmp.eq.s32.totalorder %s29, 1
      %p94 = scmp.ne.s32.totalorder %s89, %s91
      %p95 = scmp.eq.s32.totalorder %s29, 0
      %p96 = por %p94, %p95
      %p97 = scmp.ne.s32.totalorder %s89, %s91
      %p98 = scmp.eq.s32.totalorder %s34, 1
      %p99 = por %p97, %p98
      %p100 = scmp.ne.s32.totalorder %s91, %s92
      %p101 = scmp.eq.s32.totalorder %s34, 0
      %p102 = por %p100, %p101
      %p103 = scmp.ne.s32.totalorder %s91, %s92
      %p104 = scmp.eq.s32.totalorder %s35, 1
      %p105 = por %p103, %p104
      %p107 = scmp.ne.s32.totalorder %s92, %s106
      %p108 = scmp.eq.s32.totalorder %s35, 0
      %p109 = por %p107, %p108
      %s111 = sadd.s32 %s110, 1
      %p114 = scmp.eq.s32.totalorder %s29, 1
      %p115 = scmp.ne.s32.totalorder %s110, %s112
      %p116 = scmp.eq.s32.totalorder %s29, 0
      %p117 = por %p115, %p116
      %p118 = scmp.ne.s32.totalorder %s110, %s112
      %p119 = scmp.eq.s32.totalorder %s34, 1
      %p120 = por %p118, %p119
      %p121 = scmp.ne.s32.totalorder %s112, %s113
      %p122 = scmp.eq.s32.totalorder %s34, 0
      %p123 = por %p121, %p122
      %p124 = scmp.ne.s32.totalorder %s112, %s113
      %p125 = scmp.eq.s32.totalorder %s35, 1
      %p126 = por %p124, %p125
      %p128 = scmp.ne.s32.totalorder %s113, %s127
      %p129 = scmp.eq.s32.totalorder %s35, 0
      %p130 = por %p128, %p129
      %s132 = sadd.s32 %s131, 1
      %p135 = scmp.eq.s32.totalorder %s29, 1
      %p136 = scmp.ne.s32.totalorder %s131, %s133
      %p137 = scmp.eq.s32.totalorder %s29, 0
      %p138 = por %p136, %p137
      %p139 = scmp.ne.s32.totalorder %s131, %s133
      %p140 = scmp.eq.s32.totalorder %s34, 1
      %p141 = por %p139, %p140
      %p142 = scmp.ne.s32.totalorder %s133, %s134
      %p143 = scmp.eq.s32.totalorder %s34, 0
      %p144 = por %p142, %p143
      %p145 = scmp.ne.s32.totalorder %s133, %s134
      %p146 = scmp.eq.s32.totalorder %s35, 1
      %p147 = por %p145, %p146
      %p149 = scmp.ne.s32.totalorder %s134, %s148
      %p150 = scmp.eq.s32.totalorder %s35, 0
      %p151 = por %p149, %p150
      %s153 = sadd.s32 %s152, 1
      %p156 = scmp.eq.s32.totalorder %s29, 1
      %p157 = scmp.ne.s32.totalorder %s152, %s154
      %p158 = scmp.eq.s32.totalorder %s29, 0
      %p159 = por %p157, %p158
      %p160 = scmp.ne.s32.totalorder %s152, %s154
      %p161 = scmp.eq.s32.totalorder %s34, 1
      %p162 = por %p160, %p161
      %p163 = scmp.ne.s32.totalorder %s154, %s155
      %p164 = scmp.eq.s32.totalorder %s34, 0
      %p165 = por %p163, %p164
      %p166 = scmp.ne.s32.totalorder %s154, %s155
      %p167 = scmp.eq.s32.totalorder %s35, 1
      %p168 = por %p166, %p167
      %p170 = scmp.ne.s32.totalorder %s155, %s169
      %p171 = scmp.eq.s32.totalorder %s35, 0
      %p172 = por %p170, %p171
      %s174 = sadd.s32 %s173, 1
      %p177 = scmp.eq.s32.totalorder %s29, 1
      %p178 = scmp.ne.s32.totalorder %s173, %s175
      %p179 = scmp.eq.s32.totalorder %s29, 0
      %p180 = por %p178, %p179
      %p181 = scmp.ne.s32.totalorder %s173, %s175
      %p182 = scmp.eq.s32.totalorder %s34, 1
      %p183 = por %p181, %p182
      %p184 = scmp.ne.s32.totalorder %s175, %s176
      %p185 = scmp.eq.s32.totalorder %s34, 0
      %p186 = por %p184, %p185
      %p187 = scmp.ne.s32.totalorder %s175, %s176
      %p188 = scmp.eq.s32.totalorder %s35, 1
      %p189 = por %p187, %p188
      %p191 = scmp.ne.s32.totalorder %s176, %s190
      %p192 = scmp.eq.s32.totalorder %s35, 0
      %p193 = por %p191, %p192
      %s195 = sadd.s32 %s194, 1
      %p198 = scmp.eq.s32.totalorder %s29, 1
      %p199 = scmp.ne.s32.totalorder %s194, %s196
      %p200 = scmp.eq.s32.totalorder %s29, 0
      %p201 = por %p199, %p200
      %p202 = scmp.ne.s32.totalorder %s194, %s196
      %p203 = scmp.eq.s32.totalorder %s34, 1
      %p204 = por %p202, %p203
      %p205 = scmp.ne.s32.totalorder %s196, %s197
      %p206 = scmp.eq.s32.totalorder %s34, 0
      %p207 = por %p205, %p206
      %p208 = scmp.ne.s32.totalorder %s196, %s197
      %p209 = scmp.eq.s32.totalorder %s35, 1
      %p210 = por %p208, %p209
      %p212 = scmp.ne.s32.totalorder %s197, %s211
      %p213 = scmp.eq.s32.totalorder %s35, 0
      %p214 = por %p212, %p213
      %s216 = sadd.s32 %s215, 1
      %p219 = scmp.eq.s32.totalorder %s29, 1
      %p220 = scmp.ne.s32.totalorder %s215, %s217
      %p221 = scmp.eq.s32.totalorder %s29, 0
      %p222 = por %p220, %p221
      %p223 = scmp.ne.s32.totalorder %s215, %s217
      %p224 = scmp.eq.s32.totalorder %s34, 1
      %p225 = por %p223, %p224
      %p226 = scmp.ne.s32.totalorder %s217, %s218
      %p227 = scmp.eq.s32.totalorder %s34, 0
      %p228 = por %p226, %p227
      %p229 = scmp.ne.s32.totalorder %s217, %s218
      %p230 = scmp.eq.s32.totalorder %s35, 1
      %p231 = por %p229, %p230
      %p233 = scmp.ne.s32.totalorder %s218, %s232
      %p234 = scmp.eq.s32.totalorder %s35, 0
      %p235 = por %p233, %p234
      %s237 = sadd.s32 %s236, 1
      %p240 = scmp.eq.s32.totalorder %s29, 1
      %p241 = scmp.ne.s32.totalorder %s236, %s238
      %p242 = scmp.eq.s32.totalorder %s29, 0
      %p243 = por %p241, %p242
      %p244 = scmp.ne.s32.totalorder %s236, %s238
      %p245 = scmp.eq.s32.totalorder %s34, 1
      %p246 = por %p244, %p245
      %p247 = scmp.ne.s32.totalorder %s238, %s239
      %p248 = scmp.eq.s32.totalorder %s34, 0
      %p249 = por %p247, %p248
      %p250 = scmp.ne.s32.totalorder %s238, %s239
      %p251 = scmp.eq.s32.totalorder %s35, 1
      %p252 = por %p250, %p251
      %p254 = scmp.ne.s32.totalorder %s239, %s253
      %p255 = scmp.eq.s32.totalorder %s35, 0
      %p256 = por %p254, %p255
      %s257 = ssub.s32 %s29, %s36
      %p258 = scmp.eq.s32.totalorder %s257, 0
      %s260 = sadd.s32 %s259, 1
      %s261 = scalar_select %p258, %s259, %s260
      %p264 = pneg %p258
      %p265 = scmp.eq.s32.totalorder %s29, 1
      %p266 = por %p264, %p265
      %p267 = scmp.ne.s32.totalorder %s259, %s262
      %p268 = scmp.eq.s32.totalorder %s29, 0
      %p269 = por %p267, %p268
      %p270 = scmp.ne.s32.totalorder %s259, %s262
      %p271 = scmp.eq.s32.totalorder %s34, 1
      %p272 = por %p270, %p271
      %p273 = scmp.ne.s32.totalorder %s262, %s263
      %p274 = scmp.eq.s32.totalorder %s34, 0
      %p275 = por %p273, %p274
      %p276 = scmp.ne.s32.totalorder %s262, %s263
      %p277 = scmp.eq.s32.totalorder %s35, 1
      %p278 = por %p276, %p277
      %p280 = scmp.ne.s32.totalorder %s263, %s279
      %p281 = scmp.eq.s32.totalorder %s35, 0
      %p282 = por %p280, %p281
      %p283 = scmp.le.s32.totalorder 1, %s29
      %p284 = scmp.lt.s32.totalorder %s29, 3
      %p285 = pnand %p283, %p284
      %p286 = pneg %p285
      // Predicated region
      $region9: #{tpu_custom_call.1} parent=5 // pred_check
        _
      $region10: #{tpu_custom_call.1} parent=5 // pred_check_branch
        %288 = sbr.rel (%p285) target = $region12
      $region11: #{tpu_custom_call.1} parent=5 // pred_region
        %s289 = ssub.s32 %s29, 1
        // Predicated region
        $region13: #{tpu_custom_call.1} parent=11 // pred_check
          %p290 = pneg %p102
        $region14: #{tpu_custom_call.1} parent=11 // pred_check_branch
          %292 = sbr.rel (%p290) target = $region16
        $region15: #{tpu_custom_call.1} parent=11 // pred_region
          %s294 = ssub.s32 128, 128
          %295 = vsyncadd [#allocation6], %s294
          %s297 = sshll.u32 [#allocation7], 4
          %s298 = int_to_ptr.vmem [resolvable:$true] %s297
          %300 = dma.hbm_to_vmem [thread:$0]  %s2, 128, %s298, [#allocation6]
        $region16: #{tpu_custom_call.1} parent=11 // pred_fallthru
          _
        // Predicated region
        $region17: #{tpu_custom_call.1} parent=11 // pred_check
          %p301 = pneg %p123
        $region18: #{tpu_custom_call.1} parent=11 // pred_check_branch
          %303 = sbr.rel (%p301) target = $region20
        $region19: #{tpu_custom_call.1} parent=11 // pred_region
          %s305 = ssub.s32 512, 512
          %306 = vsyncadd [#allocation9], %s305
          %s307 = sshll.u32 [#allocation8], 4
          %s308 = int_to_ptr.vmem [resolvable:$true] %s307
          %313 = dma.hbm_to_vmem [thread:$0]  %s3, 512, %s308, [#allocation9], 64, 64, 4
        $region20: #{tpu_custom_call.1} parent=11 // pred_fallthru
          _
        // Predicated region
        $region21: #{tpu_custom_call.1} parent=11 // pred_check
          %p314 = pneg %p144
        $region22: #{tpu_custom_call.1} parent=11 // pred_check_branch
          %316 = sbr.rel (%p314) target = $region24
        $region23: #{tpu_custom_call.1} parent=11 // pred_region
          %s318 = ssub.s32 16, 16
          %319 = vsyncadd [#allocation9], %s318
          %s321 = sshll.u32 [#allocation10], 4
          %s322 = int_to_ptr.vmem [resolvable:$true] %s321
          %324 = dma.hbm_to_vmem [thread:$0]  %s4, 16, %s322, [#allocation9]
        $region24: #{tpu_custom_call.1} parent=11 // pred_fallthru
          _
        // Predicated region
        $region25: #{tpu_custom_call.1} parent=11 // pred_check
          %p325 = pneg %p165
        $region26: #{tpu_custom_call.1} parent=11 // pred_check_branch
          %327 = sbr.rel (%p325) target = $region28
        $region27: #{tpu_custom_call.1} parent=11 // pred_region
          %s329 = ssub.s32 16, 16
          %330 = vsyncadd [#allocation12], %s329
          %s332 = sshll.u32 [#allocation11], 4
          %s333 = int_to_ptr.vmem [resolvable:$true] %s332
          %335 = dma.hbm_to_vmem [thread:$0]  %s5, 16, %s333, [#allocation12]
        $region28: #{tpu_custom_call.1} parent=11 // pred_fallthru
          _
        // Predicated region
        $region29: #{tpu_custom_call.1} parent=11 // pred_check
          %p336 = pneg %p186
        $region30: #{tpu_custom_call.1} parent=11 // pred_check_branch
          %338 = sbr.rel (%p336) target = $region32
        $region31: #{tpu_custom_call.1} parent=11 // pred_region
          %s340 = ssub.s32 512, 512
          %341 = vsyncadd [#allocation12], %s340
          %s342 = sshll.u32 [#allocation13], 4
          %s343 = int_to_ptr.vmem [resolvable:$true] %s342
          %348 = dma.hbm_to_vmem [thread:$0]  %s6, 512, %s343, [#allocation12], 64, 64, 4
        $region32: #{tpu_custom_call.1} parent=11 // pred_fallthru
          _
        // Predicated region
        $region33: #{tpu_custom_call.1} parent=11 // pred_check
          %p349 = pneg %p207
        $region34: #{tpu_custom_call.1} parent=11 // pred_check_branch
          %351 = sbr.rel (%p349) target = $region36
        $region35: #{tpu_custom_call.1} parent=11 // pred_region
          %s353 = ssub.s32 16, 16
          %354 = vsyncadd [#allocation15], %s353
          %s356 = sshll.u32 [#allocation14], 4
          %s357 = int_to_ptr.vmem [resolvable:$true] %s356
          %359 = dma.hbm_to_vmem [thread:$0]  %s7, 16, %s357, [#allocation15]
        $region36: #{tpu_custom_call.1} parent=11 // pred_fallthru
          _
        // Predicated region
        $region37: #{tpu_custom_call.1} parent=11 // pred_check
          %p360 = pneg %p228
        $region38: #{tpu_custom_call.1} parent=11 // pred_check_branch
          %362 = sbr.rel (%p360) target = $region40
        $region39: #{tpu_custom_call.1} parent=11 // pred_region
          %s364 = ssub.s32 16, 16
          %365 = vsyncadd [#allocation15], %s364
          %s367 = sshll.u32 [#allocation16], 4
          %s368 = int_to_ptr.vmem [resolvable:$true] %s367
          %370 = dma.hbm_to_vmem [thread:$0]  %s8, 16, %s368, [#allocation15]
        $region40: #{tpu_custom_call.1} parent=11 // pred_fallthru
          _
        // Predicated region
        $region41: #{tpu_custom_call.1} parent=11 // pred_check
          %p371 = pneg %p249
        $region42: #{tpu_custom_call.1} parent=11 // pred_check_branch
          %373 = sbr.rel (%p371) target = $region44
        $region43: #{tpu_custom_call.1} parent=11 // pred_region
          %s375 = ssub.s32 16, 16
          %376 = vsyncadd [#allocation18], %s375
          %s378 = sshll.u32 [#allocation17], 4
          %s379 = int_to_ptr.vmem [resolvable:$true] %s378
          %381 = dma.hbm_to_vmem [thread:$0]  %s9, 16, %s379, [#allocation18]
        $region44: #{tpu_custom_call.1} parent=11 // pred_fallthru
          _
      $region12: #{tpu_custom_call.1} parent=5 // pred_fallthru
        _
      %p382 = scmp.lt.s32.totalorder %s29, 2
      // Predicated region
      $region45: #{tpu_custom_call.1} parent=5 // pred_check
        %p383 = pneg %p382
      $region46: #{tpu_custom_call.1} parent=5 // pred_check_branch
        %385 = sbr.rel (%p383) target = $region48
      $region47: #{tpu_custom_call.1} parent=5 // pred_region
        // Predicated region
        $region49: #{tpu_custom_call.1} parent=47 // pred_check
          %p386 = pneg %p49
        $region50: #{tpu_custom_call.1} parent=47 // pred_check_branch
          %388 = sbr.rel (%p386) target = $region52
        $region51: #{tpu_custom_call.1} parent=47 // pred_region
          %s389 = sand.u32 %s39, 1
          %s390 = scalar_lea.sflag [#allocation3], %s389
          %s391 = sand.u32 %s39, 1
          %s392 = smul.addr %s391, 16
          %s393 = scalar_lea.vmem [#allocation2], %s392
          %s395 = ssub.s32 256, 256
          %396 = vsyncadd %s390, %s395
          %s397 = smul.addr %s29, 2
          %s398 = smul.addr %s397, 128
          %s399 = scalar_lea.hbm %s0, %s398
          %s400 = sshll.u32 %s393, 4
          %s401 = int_to_ptr.vmem [resolvable:$true] %s400
          %406 = dma.hbm_to_vmem [thread:$0]  %s399, 256, %s401, %s390, 128, 128, 8
        $region52: #{tpu_custom_call.1} parent=47 // pred_fallthru
          _
        // Predicated region
        $region53: #{tpu_custom_call.1} parent=47 // pred_check
          %p407 = pneg %p75
        $region54: #{tpu_custom_call.1} parent=47 // pred_check_branch
          %409 = sbr.rel (%p407) target = $region56
        $region55: #{tpu_custom_call.1} parent=47 // pred_region
          %s410 = sand.u32 %s29, 1
          %s411 = scalar_lea.sflag [#allocation6], %s410
          %s412 = sand.u32 %s65, 1
          %s413 = scalar_lea.vmem [#allocation5], %s412
          %s415 = ssub.s32 16, 16
          %416 = vsyncadd %s411, %s415
          %s417 = smul.addr %s29, 16
          %s418 = scalar_lea.hbm %s1, %s417
          %s420 = sshll.u32 %s413, 4
          %s421 = int_to_ptr.vmem [resolvable:$true] %s420
          %423 = dma.hbm_to_vmem [thread:$0]  %s418, 16, %s421, %s411
        $region56: #{tpu_custom_call.1} parent=47 // pred_fallthru
          _
      $region48: #{tpu_custom_call.1} parent=5 // pred_fallthru
        _
      %p424 = scmp.le.s32.totalorder 1, %s29
      %p425 = scmp.lt.s32.totalorder %s29, 3
      %p426 = pnand %p424, %p425
      %p427 = pneg %p426
      // Predicated region
      $region57: #{tpu_custom_call.1} parent=5 // pred_check
        _
      $region58: #{tpu_custom_call.1} parent=5 // pred_check_branch
        %429 = sbr.rel (%p426) target = $region60
      $region59: #{tpu_custom_call.1} parent=5 // pred_region
        %s430 = ssub.s32 %s29, 1
        %s431 = sand.u32 %s42, 1
        %s432 = scalar_lea.sflag [#allocation3], %s431
        %s433 = sand.u32 %s42, 1
        %s434 = smul.addr %s433, 16
        %s435 = scalar_lea.vmem [#allocation2], %s434
        // Predicated region
        $region61: #{tpu_custom_call.1} parent=59 // pred_check
          %p436 = pneg %p55
        $region62: #{tpu_custom_call.1} parent=59 // pred_check_branch
          %438 = sbr.rel (%p436) target = $region64
        $region63: #{tpu_custom_call.1} parent=59 // pred_region
          %439 = dma.done %s432, 256
        $region64: #{tpu_custom_call.1} parent=59 // pred_fallthru
          _
        %s440 = sand.u32 %s34, 1
        %s441 = scalar_lea.sflag [#allocation6], %s440
        %s442 = sand.u32 %s68, 1
        %s443 = scalar_lea.vmem [#allocation5], %s442
        // Predicated region
        $region65: #{tpu_custom_call.1} parent=59 // pred_check
          %p444 = pneg %p81
        $region66: #{tpu_custom_call.1} parent=59 // pred_check_branch
          %446 = sbr.rel (%p444) target = $region68
        $region67: #{tpu_custom_call.1} parent=59 // pred_region
          %447 = dma.done %s441, 16
        $region68: #{tpu_custom_call.1} parent=59 // pred_fallthru
          _
        // Predicated region
        $region69: #{tpu_custom_call.1} parent=59 // pred_check
          %p448 = pneg %p102
        $region70: #{tpu_custom_call.1} parent=59 // pred_check_branch
          %450 = sbr.rel (%p448) target = $region72
        $region71: #{tpu_custom_call.1} parent=59 // pred_region
          %451 = dma.done [#allocation6], 128
        $region72: #{tpu_custom_call.1} parent=59 // pred_fallthru
          _
        // Predicated region
        $region73: #{tpu_custom_call.1} parent=59 // pred_check
          %p452 = pneg %p123
        $region74: #{tpu_custom_call.1} parent=59 // pred_check_branch
          %454 = sbr.rel (%p452) target = $region76
        $region75: #{tpu_custom_call.1} parent=59 // pred_region
          %455 = dma.done [#allocation9], 512
        $region76: #{tpu_custom_call.1} parent=59 // pred_fallthru
          _
        // Predicated region
        $region77: #{tpu_custom_call.1} parent=59 // pred_check
          %p456 = pneg %p144
        $region78: #{tpu_custom_call.1} parent=59 // pred_check_branch
          %458 = sbr.rel (%p456) target = $region80
        $region79: #{tpu_custom_call.1} parent=59 // pred_region
          %459 = dma.done [#allocation9], 16
        $region80: #{tpu_custom_call.1} parent=59 // pred_fallthru
          _
        // Predicated region
        $region81: #{tpu_custom_call.1} parent=59 // pred_check
          %p460 = pneg %p165
        $region82: #{tpu_custom_call.1} parent=59 // pred_check_branch
          %462 = sbr.rel (%p460) target = $region84
        $region83: #{tpu_custom_call.1} parent=59 // pred_region
          %463 = dma.done [#allocation12], 16
        $region84: #{tpu_custom_call.1} parent=59 // pred_fallthru
          _
        // Predicated region
        $region85: #{tpu_custom_call.1} parent=59 // pred_check
          %p464 = pneg %p186
        $region86: #{tpu_custom_call.1} parent=59 // pred_check_branch
          %466 = sbr.rel (%p464) target = $region88
        $region87: #{tpu_custom_call.1} parent=59 // pred_region
          %467 = dma.done [#allocation12], 512
        $region88: #{tpu_custom_call.1} parent=59 // pred_fallthru
          _
        // Predicated region
        $region89: #{tpu_custom_call.1} parent=59 // pred_check
          %p468 = pneg %p207
        $region90: #{tpu_custom_call.1} parent=59 // pred_check_branch
          %470 = sbr.rel (%p468) target = $region92
        $region91: #{tpu_custom_call.1} parent=59 // pred_region
          %471 = dma.done [#allocation15], 16
        $region92: #{tpu_custom_call.1} parent=59 // pred_fallthru
          _
        // Predicated region
        $region93: #{tpu_custom_call.1} parent=59 // pred_check
          %p472 = pneg %p228
        $region94: #{tpu_custom_call.1} parent=59 // pred_check_branch
          %474 = sbr.rel (%p472) target = $region96
        $region95: #{tpu_custom_call.1} parent=59 // pred_region
          %475 = dma.done [#allocation15], 16
        $region96: #{tpu_custom_call.1} parent=59 // pred_fallthru
          _
        // Predicated region
        $region97: #{tpu_custom_call.1} parent=59 // pred_check
          %p476 = pneg %p249
        $region98: #{tpu_custom_call.1} parent=59 // pred_check_branch
          %478 = sbr.rel (%p476) target = $region100
        $region99: #{tpu_custom_call.1} parent=59 // pred_region
          %479 = dma.done [#allocation18], 16
        $region100: #{tpu_custom_call.1} parent=59 // pred_fallthru
          _
        %s480 = sand.u32 %s42, 1
        %s481 = scalar_lea.sflag [#allocation3], %s480
        %s482 = sand.u32 %s42, 1
        %s483 = smul.addr %s482, 16
        %s484 = scalar_lea.vmem [#allocation2], %s483
        %p485 = pneg %p55
        %p486 = pneg %p52
        %s487 = sand.u32 %s34, 1
        %s488 = scalar_lea.sflag [#allocation6], %s487
        %s489 = sand.u32 %s68, 1
        %s490 = scalar_lea.vmem [#allocation5], %s489
        %p491 = pneg %p81
        %p492 = pneg %p78
        %p493 = pneg %p102
        %p494 = pneg %p99
        %p495 = pneg %p123
        %p496 = pneg %p120
        %p497 = pneg %p144
        %p498 = pneg %p141
        %p499 = pneg %p165
        %p500 = pneg %p162
        %p501 = pneg %p186
        %p502 = pneg %p183
        %p503 = pneg %p207
        %p504 = pneg %p204
        %p505 = pneg %p228
        %p506 = pneg %p225
        %p507 = pneg %p249
        %p508 = pneg %p246
        %p509 = pneg %p275
        %p510 = pneg %p272
        %s511 = sand.u32 %s262, 1
        %s512 = scalar_lea.sflag [#allocation4], %s511
        %s513 = sand.u32 %s262, 1
        %s514 = scalar_lea.vmem [#allocation19], %s513
        %v516 = vld [vmem:[%s435] sm:$0xff]
        %v517 = vld [vmem:[%s435 + $0x8] sm:$0xff]
        %vm520 = vcmask 1042432
        %v521 = vrot.slane %v516, 5
        %v522 = vrot.slane %v517, 5
        %v523 = vsel %vm520, %v521, %v522
        %v527 = vsel %vm520, 0.0, %v521
        %v528 = vsel %vm520, %v522, 0.0
        %531 = vrot.lane.b32.xlu0 %v527, 32
        %v532 = vpop.permute.xlu0 %531
        %533 = vrot.lane.b32.xlu0 %v523, 32
        %v534 = vpop.permute.xlu0 %533
        %535 = vrot.lane.b32.xlu0 %v528, 32
        %v536 = vpop.permute.xlu0 %535
        %vm540 = vcmask 261120
        %v541 = vsel %vm540, %v527, %v532
        %v542 = vsel %vm540, %v523, %v534
        %v543 = vsel %vm540, %v528, %v536
        %v544 = vld [vmem:[#allocation7] sm:$0x1]
        %v545 = vlaneseq
        %v546 = vshrl.u32 %v545, 7
        %v547 = vsub.s32 0, %v546
        %v548 = vrot.slane %v544, %v547
        %v549 = vmul.f32 %v541, %v548
        %v550 = vmul.f32 %v542, %v548
        %v551 = vadd.f32 %v549, 0.0
        %v552 = vadd.f32 %v550, 0.0
        %v553 = vld [vmem:[#allocation7 + $0x1] sm:$0x1]
        %v554 = vlaneseq
        %v555 = vshrl.u32 %v554, 7
        %v556 = vsub.s32 0, %v555
        %v557 = vrot.slane %v553, %v556
        %v558 = vmul.f32 %v541, %v557
        %v559 = vmul.f32 %v542, %v557
        %v560 = vmul.f32 %v543, %v557
        %vm564 = vcmask 1046528
        %v565 = vrot.slane %v558, 1
        %v566 = vrot.slane %v559, 1
        %v567 = vsel %vm564, %v565, %v566
        %v568 = vrot.slane %v560, 1
        %v569 = vsel %vm564, %v566, %v568
        %v572 = vadd.f32 %v551, %v567
        %v573 = vadd.f32 %v552, %v569
        %v574 = vld [vmem:[#allocation7 + $0x2] sm:$0x1]
        %v575 = vlaneseq
        %v576 = vshrl.u32 %v575, 7
        %v577 = vsub.s32 0, %v576
        %v578 = vrot.slane %v574, %v577
        %v579 = vmul.f32 %v541, %v578
        %v580 = vmul.f32 %v542, %v578
        %v581 = vmul.f32 %v543, %v578
        %vm585 = vcmask 1045504
        %v586 = vrot.slane %v579, 2
        %v587 = vrot.slane %v580, 2
        %v588 = vsel %vm585, %v586, %v587
        %v589 = vrot.slane %v581, 2
        %v590 = vsel %vm585, %v587, %v589
        %v593 = vadd.f32 %v572, %v588
        %v594 = vadd.f32 %v573, %v590
        %v595 = vld [vmem:[#allocation7 + $0x3] sm:$0x1]
        %v596 = vlaneseq
        %v597 = vshrl.u32 %v596, 7
        %v598 = vsub.s32 0, %v597
        %v599 = vrot.slane %v595, %v598
        %v600 = vmul.f32 %v541, %v599
        %v601 = vmul.f32 %v542, %v599
        %v602 = vmul.f32 %v543, %v599
        %vm606 = vcmask 1044480
        %v607 = vrot.slane %v600, 3
        %v608 = vrot.slane %v601, 3
        %v609 = vsel %vm606, %v607, %v608
        %v610 = vrot.slane %v602, 3
        %v611 = vsel %vm606, %v608, %v610
        %v614 = vadd.f32 %v593, %v609
        %v615 = vadd.f32 %v594, %v611
        %v616 = vld [vmem:[#allocation7 + $0x4] sm:$0x1]
        %v617 = vlaneseq
        %v618 = vshrl.u32 %v617, 7
        %v619 = vsub.s32 0, %v618
        %v620 = vrot.slane %v616, %v619
        %v621 = vmul.f32 %v541, %v620
        %v622 = vmul.f32 %v542, %v620
        %v623 = vmul.f32 %v543, %v620
        %vm627 = vcmask 1043456
        %v628 = vrot.slane %v621, 4
        %v629 = vrot.slane %v622, 4
        %v630 = vsel %vm627, %v628, %v629
        %v631 = vrot.slane %v623, 4
        %v632 = vsel %vm627, %v629, %v631
        %v635 = vadd.f32 %v614, %v630
        %v636 = vadd.f32 %v615, %v632
        %v637 = vld [vmem:[#allocation7 + $0x5] sm:$0x1]
        %v638 = vlaneseq
        %v639 = vshrl.u32 %v638, 7
        %v640 = vsub.s32 0, %v639
        %v641 = vrot.slane %v637, %v640
        %v642 = vmul.f32 %v541, %v641
        %v643 = vmul.f32 %v542, %v641
        %v644 = vmul.f32 %v543, %v641
        %v648 = vrot.slane %v642, 5
        %v649 = vrot.slane %v643, 5
        %v650 = vsel %vm520, %v648, %v649
        %v651 = vrot.slane %v644, 5
        %v652 = vsel %vm520, %v649, %v651
        %v655 = vadd.f32 %v635, %v650
        %v656 = vadd.f32 %v636, %v652
        %v657 = vld [vmem:[#allocation7 + $0x6] sm:$0x1]
        %v658 = vlaneseq
        %v659 = vshrl.u32 %v658, 7
        %v660 = vsub.s32 0, %v659
        %v661 = vrot.slane %v657, %v660
        %v662 = vmul.f32 %v541, %v661
        %v663 = vmul.f32 %v542, %v661
        %v664 = vmul.f32 %v543, %v661
        %vm668 = vcmask 1041408
        %v669 = vrot.slane %v662, 6
        %v670 = vrot.slane %v663, 6
        %v671 = vsel %vm668, %v669, %v670
        %v672 = vrot.slane %v664, 6
        %v673 = vsel %vm668, %v670, %v672
        %v676 = vadd.f32 %v655, %v671
        %v677 = vadd.f32 %v656, %v673
        %v678 = vpack.c.bf16 %v677, %v676
        %v679 = vld [vmem:[#allocation8] sm:$0xf]
        %v680 = vld [vmem:[#allocation8 + $0x4] sm:$0xf]
        %v681 = vld [vmem:[#allocation8 + $0x8] sm:$0xf]
        %v682 = vld [vmem:[#allocation8 + $0xc] sm:$0xf]
        %v683 = vld [vmem:[#allocation8 + $0x10] sm:$0xf]
        %v684 = vld [vmem:[#allocation8 + $0x14] sm:$0xf]
        %v685 = vld [vmem:[#allocation8 + $0x18] sm:$0xf]
        %v686 = vld [vmem:[#allocation8 + $0x1c] sm:$0xf]
        %v695 = vunpack.c.l.b16 %v679
        %v696 = vunpack.c.l.b16 %v680
        %v697 = vunpack.c.l.b16 %v681
        %v698 = vunpack.c.l.b16 %v682
        %v699 = vunpack.c.l.b16 %v683
        %v700 = vunpack.c.l.b16 %v684
        %v701 = vunpack.c.l.b16 %v685
        %v702 = vunpack.c.l.b16 %v686
        %v703 = vpack.c.b16 %v696, %v695
        %v704 = vpack.c.b16 %v698, %v697
        %v705 = vpack.c.b16 %v700, %v699
        %v706 = vpack.c.b16 %v702, %v701
        %vm711 = vcmask 523264
        %v713 = vsel %vm711, %v678, 0
        %715 = vmatprep.subr.bf16.mxu0 0
        %716 = vmatpush1.bf16.msra.mxu0 %v703
        %717 = vmatprep.subr.bf16.mxu0 0
        %718 = vmatpush1.bf16.msra.mxu0 %v704
        %719 = vmatprep.subr.bf16.mxu0 0
        %720 = vmatpush1.bf16.msra.mxu0 %v705
        %721 = vmatprep.subr.bf16.mxu0 0
        %722 = vmatpush1.bf16.msra.mxu0 %v706
        %723 = vmatprep.subr.bf16.mxu0 0
        %724 = vmatpush1.bf16.msra.mxu0 0
        %725 = vmatprep.subr.bf16.mxu0 0
        %726 = vmatpush1.bf16.msra.mxu0 0
        %727 = vmatprep.subr.bf16.mxu0 0
        %728 = vmatpush1.bf16.msra.mxu0 0
        %729 = vmatprep.subr.bf16.mxu0 0
        %730 = vmatpush1.bf16.msra.mxu0 0
        %731 = vmatprep.subr.bf16.mxu0 0
        %732 = vmatpush1.bf16.msra.mxu0 0
        %733 = vmatprep.subr.bf16.mxu0 0
        %734 = vmatpush1.bf16.msra.mxu0 0
        %735 = vmatprep.subr.bf16.mxu0 0
        %736 = vmatpush1.bf16.msra.mxu0 0
        %737 = vmatprep.subr.bf16.mxu0 0
        %738 = vmatpush1.bf16.msra.mxu0 0
        %739 = vmatprep.subr.bf16.mxu0 0
        %740 = vmatpush1.bf16.msra.mxu0 0
        %741 = vmatprep.subr.bf16.mxu0 0
        %742 = vmatpush1.bf16.msra.mxu0 0
        %743 = vmatprep.subr.bf16.mxu0 0
        %744 = vmatpush1.bf16.msra.mxu0 0
        %745 = vmatprep.subr.bf16.mxu0 0
        %746 = vmatpush1.bf16.msra.mxu0 0
        %747 = vmatprep.mubr.bf16.mxu0 0
        %748 = vmatmul.mubr.bf16.gmra.mrb[0].mxu0 %v713
        %v749 = vpop.f32.mrb[0].mxu0
        %v750 = vadd.f32 0.0, %v749
        %v751 = vpop.f32.mrb[0].mxu0
        %v752 = vpop.f32.mrb[0].mxu0
        %v753 = vadd.f32 0.0, %v752
        %v754 = vpop.f32.mrb[0].mxu0
        %755 = vdwg.mxu0
        %v756 = vmax.f32 %v750, 0.0
        %v757 = vmax.f32 %v753, 0.0
        %v758 = vld [vmem:[#allocation10] sm:$0x1]
        %v760 = vlaneseq
        %v761 = vshrl.u32 %v760, 7
        %v762 = vsub.s32 0, %v761
        %v763 = vrot.slane %v758, %v762
        %v765 = vmul.f32 %v756, %v763
        %v766 = vmul.f32 %v757, %v763
        %v767 = vld [vmem:[#allocation11] sm:$0x1]
        %v769 = vlaneseq
        %v770 = vshrl.u32 %v769, 7
        %v771 = vsub.s32 0, %v770
        %v772 = vrot.slane %v767, %v771
        %v774 = vadd.f32 %v765, %v772
        %v775 = vadd.f32 %v766, %v772
        %v776 = vlaneseq
        %v777 = vshrl.u32 %v776, 7
        %v778 = vadd.s32 %v777, 8
        %v779 = vld [vmem:[%s443] sm:$0x1]
        %v780 = vlaneseq
        %v781 = vshrl.u32 %v780, 7
        %v782 = vsub.s32 0, %v781
        %v783 = vrot.slane %v779, %v782
        %vm784 = vcmp.lt.s32.totalorder %v777, %v783
        %vm785 = vcmp.lt.s32.totalorder %v778, %v783
        %788 = vrot.lane.b32.xlu0 %v774, 96
        %v789 = vpop.permute.xlu0 %788
        %790 = vrot.lane.b32.xlu0 %v775, 96
        %v791 = vpop.permute.xlu0 %790
        %v794 = vsel %vm784, %v789, -1e+09
        %v795 = vsel %vm785, %v791, -1e+09
        %v796 = vsel %vm540, %v794, -inf
        %v797 = vsel %vm540, %v795, -inf
        %v798 = vmax.f32 %v796, %v797
        %v799 = vrot.slane %v798, 4
        %v800 = vmax.f32 %v798, %v799
        %v801 = vrot.slane %v800, 2
        %v802 = vmax.f32 %v800, %v801
        %v803 = vrot.slane %v802, 1
        %v804 = vmax.f32 %v802, %v803
        %v805 = vsub.f32 %v794, %v804
        %v806 = vsub.f32 %v795, %v804
        %v807 = vmul.f32 %v805, 1.442695
        %v808 = vpow.pop %v807
        %v809 = vmul.f32 %v806, 1.442695
        %v810 = vpow.pop %v809
        %v811 = vsel %vm540, %v808, 0.0
        %v812 = vsel %vm540, %v810, 0.0
        %v813 = vadd.f32 %v811, %v812
        %v814 = vrot.slane %v813, 4
        %v815 = vadd.f32 %v813, %v814
        %v816 = vrot.slane %v815, 2
        %v817 = vadd.f32 %v815, %v816
        %v818 = vrot.slane %v817, 1
        %v819 = vadd.f32 %v817, %v818
        %v820 = vrcp.pop %v819
        %v821 = vmul.f32 %v808, %v820
        %v822 = vmul.f32 %v810, %v820
        %v823 = vmul.f32 %v774, %v821
        %v824 = vmul.f32 %v775, %v822
        %v825 = vsel %vm540, %v823, 0.0
        %v826 = vsel %vm540, %v824, 0.0
        %v827 = vadd.f32 %v825, %v826
        %v828 = vrot.slane %v827, 4
        %v829 = vadd.f32 %v827, %v828
        %v830 = vrot.slane %v829, 2
        %v831 = vadd.f32 %v829, %v830
        %v832 = vrot.slane %v831, 1
        %v833 = vadd.f32 %v831, %v832
        %v834 = vsel %vm540, %v774, -inf
        %v835 = vsel %vm540, %v775, -inf
        %v836 = vmax.f32 %v834, %v835
        %v837 = vrot.slane %v836, 4
        %v838 = vmax.f32 %v836, %v837
        %v839 = vrot.slane %v838, 2
        %v840 = vmax.f32 %v838, %v839
        %v841 = vrot.slane %v840, 1
        %v842 = vmax.f32 %v840, %v841
        %844 = vrot.lane.b32.xlu0 %v842, 32
        %v845 = vpop.permute.xlu0 %844
        %v847 = vsel %vm540, %v833, %v845
        %v848 = vpack.c.bf16 %v847, %v847
        %v849 = vld [vmem:[#allocation13] sm:$0xf]
        %v850 = vld [vmem:[#allocation13 + $0x4] sm:$0xf]
        %v851 = vld [vmem:[#allocation13 + $0x8] sm:$0xf]
        %v852 = vld [vmem:[#allocation13 + $0xc] sm:$0xf]
        %v853 = vld [vmem:[#allocation13 + $0x10] sm:$0xf]
        %v854 = vld [vmem:[#allocation13 + $0x14] sm:$0xf]
        %v855 = vld [vmem:[#allocation13 + $0x18] sm:$0xf]
        %v856 = vld [vmem:[#allocation13 + $0x1c] sm:$0xf]
        %v857 = vld [vmem:[#allocation14] sm:$0x1]
        %v866 = vunpack.c.l.b16 %v849
        %v867 = vunpack.c.l.b16 %v850
        %v868 = vunpack.c.l.b16 %v851
        %v869 = vunpack.c.l.b16 %v852
        %v870 = vunpack.c.l.b16 %v853
        %v871 = vunpack.c.l.b16 %v854
        %v872 = vunpack.c.l.b16 %v855
        %v873 = vunpack.c.l.b16 %v856
        %v874 = vpack.c.b16 %v867, %v866
        %v875 = vpack.c.b16 %v869, %v868
        %v876 = vpack.c.b16 %v871, %v870
        %v877 = vpack.c.b16 %v873, %v872
        %v883 = vsel %vm711, %v848, 0
        %885 = vmatprep.subr.bf16.mxu0 0
        %886 = vmatpush1.bf16.msra.mxu0 %v874
        %887 = vmatprep.subr.bf16.mxu0 0
        %888 = vmatpush1.bf16.msra.mxu0 %v875
        %889 = vmatprep.subr.bf16.mxu0 0
        %890 = vmatpush1.bf16.msra.mxu0 %v876
        %891 = vmatprep.subr.bf16.mxu0 0
        %892 = vmatpush1.bf16.msra.mxu0 %v877
        %893 = vmatprep.subr.bf16.mxu0 0
        %894 = vmatpush1.bf16.msra.mxu0 0
        %895 = vmatprep.subr.bf16.mxu0 0
        %896 = vmatpush1.bf16.msra.mxu0 0
        %897 = vmatprep.subr.bf16.mxu0 0
        %898 = vmatpush1.bf16.msra.mxu0 0
        %899 = vmatprep.subr.bf16.mxu0 0
        %900 = vmatpush1.bf16.msra.mxu0 0
        %901 = vmatprep.subr.bf16.mxu0 0
        %902 = vmatpush1.bf16.msra.mxu0 0
        %903 = vmatprep.subr.bf16.mxu0 0
        %904 = vmatpush1.bf16.msra.mxu0 0
        %905 = vmatprep.subr.bf16.mxu0 0
        %906 = vmatpush1.bf16.msra.mxu0 0
        %907 = vmatprep.subr.bf16.mxu0 0
        %908 = vmatpush1.bf16.msra.mxu0 0
        %909 = vmatprep.subr.bf16.mxu0 0
        %910 = vmatpush1.bf16.msra.mxu0 0
        %911 = vmatprep.subr.bf16.mxu0 0
        %912 = vmatpush1.bf16.msra.mxu0 0
        %913 = vmatprep.subr.bf16.mxu0 0
        %914 = vmatpush1.bf16.msra.mxu0 0
        %915 = vmatprep.subr.bf16.mxu0 0
        %916 = vmatpush1.bf16.msra.mxu0 0
        %917 = vmatprep.mubr.bf16.mxu0 0
        %918 = vmatmul.mubr.bf16.gmra.mrb[0].mxu0 %v883
        %v919 = vpop.f32.mrb[0].mxu0
        %v920 = vadd.f32 %v857, %v919
        %v921 = vpop.f32.mrb[0].mxu0
        %v922 = vpop.f32.mrb[0].mxu0
        %v923 = vpop.f32.mrb[0].mxu0
        %924 = vdwg.mxu0
        %v925 = vmax.f32 %v920, 0.0
        %v926 = vld [vmem:[#allocation16] sm:$0x1]
        %v927 = vmul.f32 %v925, %v926
        %v928 = vld [vmem:[#allocation17] sm:$0x1]
        %v929 = vadd.f32 %v927, %v928
        %930 = vst [vmem:[%s514] sm:$0x1] %v929
        %s931 = sand.u32 %s262, 1
        %s932 = scalar_lea.sflag [#allocation4], %s931
        %s933 = sand.u32 %s262, 1
        %s934 = scalar_lea.vmem [#allocation19], %s933
        // Predicated region
        $region101: #{tpu_custom_call.1} parent=59 // pred_check
          %p935 = pneg %p272
        $region102: #{tpu_custom_call.1} parent=59 // pred_check_branch
          %937 = sbr.rel (%p935) target = $region104
        $region103: #{tpu_custom_call.1} parent=59 // pred_region
          %s939 = ssub.s32 16, 16
          %940 = vsyncadd %s932, %s939
          %s941 = smul.addr %s34, 16
          %s942 = scalar_lea.hbm %s10, %s941
          %s944 = sshll.u32 %s934, 4
          %s945 = int_to_ptr.vmem [resolvable:$true] %s944
          %947 = dma.vmem_to_hbm [thread:$0]  %s945, 16, %s942, %s932
        $region104: #{tpu_custom_call.1} parent=59 // pred_fallthru
          _
      $region60: #{tpu_custom_call.1} parent=5 // pred_fallthru
        _
      %p948 = scmp.le.s32.totalorder 2, %s29
      // Predicated region
      $region105: #{tpu_custom_call.1} parent=5 // pred_check
        %p949 = pneg %p948
      $region106: #{tpu_custom_call.1} parent=5 // pred_check_branch
        %951 = sbr.rel (%p949) target = $region108
      $region107: #{tpu_custom_call.1} parent=5 // pred_region
        %s952 = ssub.s32 %s29, 2
        // Predicated region
        $region109: #{tpu_custom_call.1} parent=107 // pred_check
          %p953 = pneg %p278
        $region110: #{tpu_custom_call.1} parent=107 // pred_check_branch
          %955 = sbr.rel (%p953) target = $region112
        $region111: #{tpu_custom_call.1} parent=107 // pred_region
          %s956 = sand.u32 %s263, 1
          %s957 = scalar_lea.sflag [#allocation4], %s956
          %s958 = sand.u32 %s263, 1
          %s959 = scalar_lea.vmem [#allocation19], %s958
          %960 = dma.done %s957, 16
        $region112: #{tpu_custom_call.1} parent=107 // pred_fallthru
          _
      $region108: #{tpu_custom_call.1} parent=5 // pred_fallthru
        _
    $region6: #{tpu_custom_call.1} parent=1 // loop_footer
      %s33 = sadd.s32 1, %s29
    $region7: #{tpu_custom_call.1} parent=1 // loop_footer_branch
      %28 = sbr.rel target = $region3
    $region8: #{tpu_custom_call.1} parent=1 // loop_exit
      _
    %961 = vsyncpa [#allocation3], 1
    %s962 = scalar_lea.sflag [#allocation3], 1
    %963 = vsyncpa %s962, 1
    %964 = vsyncpa [#allocation6], 1
    %s965 = scalar_lea.sflag [#allocation6], 1
    %966 = vsyncpa %s965, 1
    %967 = vsyncpa [#allocation9], 1
    %968 = vsyncpa [#allocation12], 1
    %969 = vsyncpa [#allocation15], 1
    %970 = vsyncpa [#allocation18], 1
    %971 = vsyncpa [#allocation4], 1
    %s972 = scalar_lea.sflag [#allocation4], 1
    %973 = vsyncpa %s972, 1

// kernel: tpu_custom_call.1
$region0: #{tpu_custom_call.1}
  #allocation0 [shape = 'u32[]', space=smem, size = 0x4, offset = 0x4, fixed_abs, tag = 'smem constant byte address 0x4 - core index']
  #allocation1 [shape = 'u32[144,128]{1,0:T(1,128)}', space=vmem, size = 0x12000, scoped, tag = 'internal scratch']
  %s0 = inlined_call_operand.hbm [shape: f32[2,16,32], index: 0, kind: input, shape index: {}]
  %s1 = inlined_call_operand.hbm [shape: s32[2,1,32], index: 1, kind: input, shape index: {}]
  %s2 = inlined_call_operand.hbm [shape: f32[7,64], index: 2, kind: input, shape index: {}]
  %s3 = inlined_call_operand.hbm [shape: bf16[64,64], index: 3, kind: input, shape index: {}]
  %s4 = inlined_call_operand.hbm [shape: f32[1,64], index: 4, kind: input, shape index: {}]
  %s5 = inlined_call_operand.hbm [shape: f32[1,64], index: 5, kind: input, shape index: {}]
  %s6 = inlined_call_operand.hbm [shape: bf16[64,128], index: 6, kind: input, shape index: {}]
  %s7 = inlined_call_operand.hbm [shape: f32[1,128], index: 7, kind: input, shape index: {}]
  %s8 = inlined_call_operand.hbm [shape: f32[1,128], index: 8, kind: input, shape index: {}]
  %s9 = inlined_call_operand.hbm [shape: f32[1,128], index: 9, kind: input, shape index: {}]
  %s10 = inlined_call_operand.hbm [shape: f32[2,1,128], index: 10, kind: output, shape index: {}]
  %s11 = sld [smem:[#allocation0]]
  $region113: #{tpu_custom_call.1} parent=0
    _
  %s13 = ssub.s32 1, %s11
  %s14 = scalar_select 0, %s13, %s11
  $region1: #{tpu_custom_call.1} parent=0
    #allocation2 [shape = 'u8[16384]{0}', space=vmem, size = 0x4000, scoped, tag = 'input window, operand 0']
    #allocation3 [shape = 's32[2]{0}', space=sflag, size = 0x8, scoped, tag = 'scoped memory for tpu_custom_call.1']
    #allocation4 [shape = 's32[2]{0}', space=sflag, size = 0x8, scoped, tag = 'scoped memory for tpu_custom_call.1']
    #allocation5 [shape = 'u8[1024]{0}', space=vmem, size = 0x400, scoped, tag = 'input window, operand 1']
    #allocation6 [shape = 's32[2]{0}', space=sflag, size = 0x8, scoped, tag = 'scoped memory for tpu_custom_call.1']
    #allocation7 [shape = 'u8[4096]{0}', space=vmem, size = 0x1000, scoped, tag = 'input window, operand 2, single buffered']
    #allocation8 [shape = 'u8[16384]{0}', space=vmem, size = 0x4000, scoped, tag = 'input window, operand 3, single buffered']
    #allocation9 [shape = 's32[1]{0}', space=sflag, size = 0x4, scoped, tag = 'scoped memory for tpu_custom_call.1']
    #allocation10 [shape = 'u8[512]{0}', space=vmem, size = 0x400, scoped, tag = 'input window, operand 4, single buffered']
    #allocation11 [shape = 'u8[512]{0}', space=vmem, size = 0x400, scoped, tag = 'input window, operand 5, single buffered']
    #allocation12 [shape = 's32[1]{0}', space=sflag, size = 0x4, scoped, tag = 'scoped memory for tpu_custom_call.1']
    #allocation13 [shape = 'u8[16384]{0}', space=vmem, size = 0x4000, scoped, tag = 'input window, operand 6, single buffered']
    #allocation14 [shape = 'u8[512]{0}', space=vmem, size = 0x400, scoped, tag = 'input window, operand 7, single buffered']
    #allocation15 [shape = 's32[1]{0}', space=sflag, size = 0x4, scoped, tag = 'scoped memory for tpu_custom_call.1']
    #allocation16 [shape = 'u8[512]{0}', space=vmem, size = 0x400, scoped, tag = 'input window, operand 8, single buffered']
    #allocation17 [shape = 'u8[512]{0}', space=vmem, size = 0x400, scoped, tag = 'input window, operand 9, single buffered']
    #allocation18 [shape = 's32[1]{0}', space=sflag, size = 0x4, scoped, tag = 'scoped memory for tpu_custom_call.1']
    #allocation19 [shape = 'u8[1024]{0}', space=vmem, size = 0x400, scoped, tag = 'output window, operand 0']
    %15 = vsyncpa [#allocation3], 0
    %s16 = scalar_lea.sflag [#allocation3], 1
    %17 = vsyncpa %s16, 0
    %18 = vsyncpa [#allocation6], 0
    %s19 = scalar_lea.sflag [#allocation6], 1
    %20 = vsyncpa %s19, 0
    %21 = vsyncpa [#allocation9], 0
    %22 = vsyncpa [#allocation12], 0
    %23 = vsyncpa [#allocation15], 0
    %24 = vsyncpa [#allocation18], 0
    %25 = vsyncpa [#allocation4], 0
    %s26 = scalar_lea.sflag [#allocation4], 1
    %27 = vsyncpa %s26, 0
    loop: start=0, step=1, limit=4
    $region2: #{tpu_custom_call.1} parent=1 // loop_pre_header
      _
    $region3: #{tpu_custom_call.1} parent=1 // loop_header
      %s29 = sphi 0, %s33
      %p30 = scmp.ge.s32.totalorder %s29, 4
      %s39 = sphi 0, %s41
      %s42 = sphi 0, %s39
      %s43 = sphi 0, %s42
      %s59 = sphi 0, %s43
      %s65 = sphi 0, %s67
      %s68 = sphi 0, %s65
      %s69 = sphi 0, %s68
      %s85 = sphi 0, %s69
      %s89 = sphi 0, %s89
      %s91 = sphi 0, %s89
      %s92 = sphi 0, %s91
      %s106 = sphi 0, %s92
      %s110 = sphi 0, %s110
      %s112 = sphi 0, %s110
      %s113 = sphi 0, %s112
      %s127 = sphi 0, %s113
      %s131 = sphi 0, %s131
      %s133 = sphi 0, %s131
      %s134 = sphi 0, %s133
      %s148 = sphi 0, %s134
      %s152 = sphi 0, %s152
      %s154 = sphi 0, %s152
      %s155 = sphi 0, %s154
      %s169 = sphi 0, %s155
      %s173 = sphi 0, %s173
      %s175 = sphi 0, %s173
      %s176 = sphi 0, %s175
      %s190 = sphi 0, %s176
      %s194 = sphi 0, %s194
      %s196 = sphi 0, %s194
      %s197 = sphi 0, %s196
      %s211 = sphi 0, %s197
      %s215 = sphi 0, %s215
      %s217 = sphi 0, %s215
      %s218 = sphi 0, %s217
      %s232 = sphi 0, %s218
      %s236 = sphi 0, %s236
      %s238 = sphi 0, %s236
      %s239 = sphi 0, %s238
      %s253 = sphi 0, %s239
      %s259 = sphi 0, %s261
      %s262 = sphi 0, %s259
      %s263 = sphi 0, %s262
      %s279 = sphi 0, %s263
    $region4: #{tpu_custom_call.1} parent=1 // loop_header_branch
      %32 = sbr.rel (%p30) target = $region8
    $region5: #{tpu_custom_call.1} parent=1 // loop_body
      %s34 = ssub.s32 %s29, 1
      %s35 = ssub.s32 %s29, 2
      %s36 = sadd.s32 %s29, 1
      %s37 = ssub.s32 %s29, %s36
      %p38 = scmp.eq.s32.totalorder %s37, 0
      %s40 = sadd.s32 %s39, 1
      %s41 = scalar_select %p38, %s39, %s40
      %p44 = pneg %p38
      %p45 = scmp.eq.s32.totalorder %s29, 1
      %p46 = por %p44, %p45
      %p47 = scmp.ne.s32.totalorder %s39, %s42
      %p48 = scmp.eq.s32.totalorder %s29, 0
      %p49 = por %p47, %p48
      %p50 = scmp.ne.s32.totalorder %s39, %s42
      %p51 = scmp.eq.s32.totalorder %s34, 1
      %p52 = por %p50, %p51
      %p53 = scmp.ne.s32.totalorder %s42, %s43
      %p54 = scmp.eq.s32.totalorder %s34, 0
      %p55 = por %p53, %p54
      %p56 = scmp.ne.s32.totalorder %s42, %s43
      %p57 = scmp.eq.s32.totalorder %s35, 1
      %p58 = por %p56, %p57
      %p60 = scmp.ne.s32.totalorder %s43, %s59
      %p61 = scmp.eq.s32.totalorder %s35, 0
      %p62 = por %p60, %p61
      %s63 = ssub.s32 %s29, %s36
      %p64 = scmp.eq.s32.totalorder %s63, 0
      %s66 = sadd.s32 %s65, 1
      %s67 = scalar_select %p64, %s65, %s66
      %p70 = pneg %p64
      %p71 = scmp.eq.s32.totalorder %s29, 1
      %p72 = por %p70, %p71
      %p73 = scmp.ne.s32.totalorder %s65, %s68
      %p74 = scmp.eq.s32.totalorder %s29, 0
      %p75 = por %p73, %p74
      %p76 = scmp.ne.s32.totalorder %s65, %s68
      %p77 = scmp.eq.s32.totalorder %s34, 1
      %p78 = por %p76, %p77
      %p79 = scmp.ne.s32.totalorder %s68, %s69
      %p80 = scmp.eq.s32.totalorder %s34, 0
      %p81 = por %p79, %p80
      %p82 = scmp.ne.s32.totalorder %s68, %s69
      %p83 = scmp.eq.s32.totalorder %s35, 1
      %p84 = por %p82, %p83
      %p86 = scmp.ne.s32.totalorder %s69, %s85
      %p87 = scmp.eq.s32.totalorder %s35, 0
      %p88 = por %p86, %p87
      %s90 = sadd.s32 %s89, 1
      %p93 = scmp.eq.s32.totalorder %s29, 1
      %p94 = scmp.ne.s32.totalorder %s89, %s91
      %p95 = scmp.eq.s32.totalorder %s29, 0
      %p96 = por %p94, %p95
      %p97 = scmp.ne.s32.totalorder %s89, %s91
      %p98 = scmp.eq.s32.totalorder %s34, 1
      %p99 = por %p97, %p98
      %p100 = scmp.ne.s32.totalorder %s91, %s92
      %p101 = scmp.eq.s32.totalorder %s34, 0
      %p102 = por %p100, %p101
      %p103 = scmp.ne.s32.totalorder %s91, %s92
      %p104 = scmp.eq.s32.totalorder %s35, 1
      %p105 = por %p103, %p104
      %p107 = scmp.ne.s32.totalorder %s92, %s106
      %p108 = scmp.eq.s32.totalorder %s35, 0
      %p109 = por %p107, %p108
      %s111 = sadd.s32 %s110, 1
      %p114 = scmp.eq.s32.totalorder %s29, 1
      %p115 = scmp.ne.s32.totalorder %s110, %s112
      %p116 = scmp.eq.s32.totalorder %s29, 0
      %p117 = por %p115, %p116
      %p118 = scmp.ne.s32.totalorder %s110, %s112
      %p119 = scmp.eq.s32.totalorder %s34, 1
      %p120 = por %p118, %p119
      %p121 = scmp.ne.s32.totalorder %s112, %s113
      %p122 = scmp.eq.s32.totalorder %s34, 0
      %p123 = por %p121, %p122
      %p124 = scmp.ne.s32.totalorder %s112, %s113
      %p125 = scmp.eq.s32.totalorder %s35, 1
      %p126 = por %p124, %p125
      %p128 = scmp.ne.s32.totalorder %s113, %s127
      %p129 = scmp.eq.s32.totalorder %s35, 0
      %p130 = por %p128, %p129
      %s132 = sadd.s32 %s131, 1
      %p135 = scmp.eq.s32.totalorder %s29, 1
      %p136 = scmp.ne.s32.totalorder %s131, %s133
      %p137 = scmp.eq.s32.totalorder %s29, 0
      %p138 = por %p136, %p137
      %p139 = scmp.ne.s32.totalorder %s131, %s133
      %p140 = scmp.eq.s32.totalorder %s34, 1
      %p141 = por %p139, %p140
      %p142 = scmp.ne.s32.totalorder %s133, %s134
      %p143 = scmp.eq.s32.totalorder %s34, 0
      %p144 = por %p142, %p143
      %p145 = scmp.ne.s32.totalorder %s133, %s134
      %p146 = scmp.eq.s32.totalorder %s35, 1
      %p147 = por %p145, %p146
      %p149 = scmp.ne.s32.totalorder %s134, %s148
      %p150 = scmp.eq.s32.totalorder %s35, 0
      %p151 = por %p149, %p150
      %s153 = sadd.s32 %s152, 1
      %p156 = scmp.eq.s32.totalorder %s29, 1
      %p157 = scmp.ne.s32.totalorder %s152, %s154
      %p158 = scmp.eq.s32.totalorder %s29, 0
      %p159 = por %p157, %p158
      %p160 = scmp.ne.s32.totalorder %s152, %s154
      %p161 = scmp.eq.s32.totalorder %s34, 1
      %p162 = por %p160, %p161
      %p163 = scmp.ne.s32.totalorder %s154, %s155
      %p164 = scmp.eq.s32.totalorder %s34, 0
      %p165 = por %p163, %p164
      %p166 = scmp.ne.s32.totalorder %s154, %s155
      %p167 = scmp.eq.s32.totalorder %s35, 1
      %p168 = por %p166, %p167
      %p170 = scmp.ne.s32.totalorder %s155, %s169
      %p171 = scmp.eq.s32.totalorder %s35, 0
      %p172 = por %p170, %p171
      %s174 = sadd.s32 %s173, 1
      %p177 = scmp.eq.s32.totalorder %s29, 1
      %p178 = scmp.ne.s32.totalorder %s173, %s175
      %p179 = scmp.eq.s32.totalorder %s29, 0
      %p180 = por %p178, %p179
      %p181 = scmp.ne.s32.totalorder %s173, %s175
      %p182 = scmp.eq.s32.totalorder %s34, 1
      %p183 = por %p181, %p182
      %p184 = scmp.ne.s32.totalorder %s175, %s176
      %p185 = scmp.eq.s32.totalorder %s34, 0
      %p186 = por %p184, %p185
      %p187 = scmp.ne.s32.totalorder %s175, %s176
      %p188 = scmp.eq.s32.totalorder %s35, 1
      %p189 = por %p187, %p188
      %p191 = scmp.ne.s32.totalorder %s176, %s190
      %p192 = scmp.eq.s32.totalorder %s35, 0
      %p193 = por %p191, %p192
      %s195 = sadd.s32 %s194, 1
      %p198 = scmp.eq.s32.totalorder %s29, 1
      %p199 = scmp.ne.s32.totalorder %s194, %s196
      %p200 = scmp.eq.s32.totalorder %s29, 0
      %p201 = por %p199, %p200
      %p202 = scmp.ne.s32.totalorder %s194, %s196
      %p203 = scmp.eq.s32.totalorder %s34, 1
      %p204 = por %p202, %p203
      %p205 = scmp.ne.s32.totalorder %s196, %s197
      %p206 = scmp.eq.s32.totalorder %s34, 0
      %p207 = por %p205, %p206
      %p208 = scmp.ne.s32.totalorder %s196, %s197
      %p209 = scmp.eq.s32.totalorder %s35, 1
      %p210 = por %p208, %p209
      %p212 = scmp.ne.s32.totalorder %s197, %s211
      %p213 = scmp.eq.s32.totalorder %s35, 0
      %p214 = por %p212, %p213
      %s216 = sadd.s32 %s215, 1
      %p219 = scmp.eq.s32.totalorder %s29, 1
      %p220 = scmp.ne.s32.totalorder %s215, %s217
      %p221 = scmp.eq.s32.totalorder %s29, 0
      %p222 = por %p220, %p221
      %p223 = scmp.ne.s32.totalorder %s215, %s217
      %p224 = scmp.eq.s32.totalorder %s34, 1
      %p225 = por %p223, %p224
      %p226 = scmp.ne.s32.totalorder %s217, %s218
      %p227 = scmp.eq.s32.totalorder %s34, 0
      %p228 = por %p226, %p227
      %p229 = scmp.ne.s32.totalorder %s217, %s218
      %p230 = scmp.eq.s32.totalorder %s35, 1
      %p231 = por %p229, %p230
      %p233 = scmp.ne.s32.totalorder %s218, %s232
      %p234 = scmp.eq.s32.totalorder %s35, 0
      %p235 = por %p233, %p234
      %s237 = sadd.s32 %s236, 1
      %p240 = scmp.eq.s32.totalorder %s29, 1
      %p241 = scmp.ne.s32.totalorder %s236, %s238
      %p242 = scmp.eq.s32.totalorder %s29, 0
      %p243 = por %p241, %p242
      %p244 = scmp.ne.s32.totalorder %s236, %s238
      %p245 = scmp.eq.s32.totalorder %s34, 1
      %p246 = por %p244, %p245
      %p247 = scmp.ne.s32.totalorder %s238, %s239
      %p248 = scmp.eq.s32.totalorder %s34, 0
      %p249 = por %p247, %p248
      %p250 = scmp.ne.s32.totalorder %s238, %s239
      %p251 = scmp.eq.s32.totalorder %s35, 1
      %p252 = por %p250, %p251
      %p254 = scmp.ne.s32.totalorder %s239, %s253
      %p255 = scmp.eq.s32.totalorder %s35, 0
      %p256 = por %p254, %p255
      %s257 = ssub.s32 %s29, %s36
      %p258 = scmp.eq.s32.totalorder %s257, 0
      %s260 = sadd.s32 %s259, 1
      %s261 = scalar_select %p258, %s259, %s260
      %p264 = pneg %p258
      %p265 = scmp.eq.s32.totalorder %s29, 1
      %p266 = por %p264, %p265
      %p267 = scmp.ne.s32.totalorder %s259, %s262
      %p268 = scmp.eq.s32.totalorder %s29, 0
      %p269 = por %p267, %p268
      %p270 = scmp.ne.s32.totalorder %s259, %s262
      %p271 = scmp.eq.s32.totalorder %s34, 1
      %p272 = por %p270, %p271
      %p273 = scmp.ne.s32.totalorder %s262, %s263
      %p274 = scmp.eq.s32.totalorder %s34, 0
      %p275 = por %p273, %p274
      %p276 = scmp.ne.s32.totalorder %s262, %s263
      %p277 = scmp.eq.s32.totalorder %s35, 1
      %p278 = por %p276, %p277
      %p280 = scmp.ne.s32.totalorder %s263, %s279
      %p281 = scmp.eq.s32.totalorder %s35, 0
      %p282 = por %p280, %p281
      %p283 = scmp.le.s32.totalorder 1, %s29
      %p284 = scmp.lt.s32.totalorder %s29, 3
      %p285 = pnand %p283, %p284
      %p286 = pneg %p285
      // Predicated region
      $region9: #{tpu_custom_call.1} parent=5 // pred_check
        _
      $region10: #{tpu_custom_call.1} parent=5 // pred_check_branch
        %288 = sbr.rel (%p285) target = $region12
      $region11: #{tpu_custom_call.1} parent=5 // pred_region
        %s289 = ssub.s32 %s29, 1
        // Predicated region
        $region13: #{tpu_custom_call.1} parent=11 // pred_check
          %p290 = pneg %p102
        $region14: #{tpu_custom_call.1} parent=11 // pred_check_branch
          %292 = sbr.rel (%p290) target = $region16
        $region15: #{tpu_custom_call.1} parent=11 // pred_region
          %s294 = ssub.s32 128, 128
          %295 = vsyncadd [#allocation6], %s294
          %s297 = sshll.u32 [#allocation7], 4
          %s298 = int_to_ptr.vmem [resolvable:$true] %s297
          %300 = dma.hbm_to_vmem [thread:$0]  %s2, 128, %s298, [#allocation6]
        $region16: #{tpu_custom_call.1} parent=11 // pred_fallthru
          _
        // Predicated region
        $region17: #{tpu_custom_call.1} parent=11 // pred_check
          %p301 = pneg %p123
        $region18: #{tpu_custom_call.1} parent=11 // pred_check_branch
          %303 = sbr.rel (%p301) target = $region20
        $region19: #{tpu_custom_call.1} parent=11 // pred_region
          %s305 = ssub.s32 512, 512
          %306 = vsyncadd [#allocation9], %s305
          %s307 = sshll.u32 [#allocation8], 4
          %s308 = int_to_ptr.vmem [resolvable:$true] %s307
          %313 = dma.hbm_to_vmem [thread:$0]  %s3, 512, %s308, [#allocation9], 64, 64, 4
        $region20: #{tpu_custom_call.1} parent=11 // pred_fallthru
          _
        // Predicated region
        $region21: #{tpu_custom_call.1} parent=11 // pred_check
          %p314 = pneg %p144
        $region22: #{tpu_custom_call.1} parent=11 // pred_check_branch
          %316 = sbr.rel (%p314) target = $region24
        $region23: #{tpu_custom_call.1} parent=11 // pred_region
          %s318 = ssub.s32 16, 16
          %319 = vsyncadd [#allocation9], %s318
          %s321 = sshll.u32 [#allocation10], 4
          %s322 = int_to_ptr.vmem [resolvable:$true] %s321
          %324 = dma.hbm_to_vmem [thread:$0]  %s4, 16, %s322, [#allocation9]
        $region24: #{tpu_custom_call.1} parent=11 // pred_fallthru
          _
        // Predicated region
        $region25: #{tpu_custom_call.1} parent=11 // pred_check
          %p325 = pneg %p165
        $region26: #{tpu_custom_call.1} parent=11 // pred_check_branch
          %327 = sbr.rel (%p325) target = $region28
        $region27: #{tpu_custom_call.1} parent=11 // pred_region
          %s329 = ssub.s32 16, 16
          %330 = vsyncadd [#allocation12], %s329
          %s332 = sshll.u32 [#allocation11], 4
          %s333 = int_to_ptr.vmem [resolvable:$true] %s332
          %335 = dma.hbm_to_vmem [thread:$0]  %s5, 16, %s333, [#allocation12]
        $region28: #{tpu_custom_call.1} parent=11 // pred_fallthru
          _
        // Predicated region
        $region29: #{tpu_custom_call.1} parent=11 // pred_check
          %p336 = pneg %p186
        $region30: #{tpu_custom_call.1} parent=11 // pred_check_branch
          %338 = sbr.rel (%p336) target = $region32
        $region31: #{tpu_custom_call.1} parent=11 // pred_region
          %s340 = ssub.s32 512, 512
          %341 = vsyncadd [#allocation12], %s340
          %s342 = sshll.u32 [#allocation13], 4
          %s343 = int_to_ptr.vmem [resolvable:$true] %s342
          %348 = dma.hbm_to_vmem [thread:$0]  %s6, 512, %s343, [#allocation12], 64, 64, 4
        $region32: #{tpu_custom_call.1} parent=11 // pred_fallthru
          _
        // Predicated region
        $region33: #{tpu_custom_call.1} parent=11 // pred_check
          %p349 = pneg %p207
        $region34: #{tpu_custom_call.1} parent=11 // pred_check_branch
          %351 = sbr.rel (%p349) target = $region36
        $region35: #{tpu_custom_call.1} parent=11 // pred_region
          %s353 = ssub.s32 16, 16
          %354 = vsyncadd [#allocation15], %s353
          %s356 = sshll.u32 [#allocation14], 4
          %s357 = int_to_ptr.vmem [resolvable:$true] %s356
          %359 = dma.hbm_to_vmem [thread:$0]  %s7, 16, %s357, [#allocation15]
        $region36: #{tpu_custom_call.1} parent=11 // pred_fallthru
          _
        // Predicated region
        $region37: #{tpu_custom_call.1} parent=11 // pred_check
          %p360 = pneg %p228
        $region38: #{tpu_custom_call.1} parent=11 // pred_check_branch
          %362 = sbr.rel (%p360) target = $region40
        $region39: #{tpu_custom_call.1} parent=11 // pred_region
          %s364 = ssub.s32 16, 16
          %365 = vsyncadd [#allocation15], %s364
          %s367 = sshll.u32 [#allocation16], 4
          %s368 = int_to_ptr.vmem [resolvable:$true] %s367
          %370 = dma.hbm_to_vmem [thread:$0]  %s8, 16, %s368, [#allocation15]
        $region40: #{tpu_custom_call.1} parent=11 // pred_fallthru
          _
        // Predicated region
        $region41: #{tpu_custom_call.1} parent=11 // pred_check
          %p371 = pneg %p249
        $region42: #{tpu_custom_call.1} parent=11 // pred_check_branch
          %373 = sbr.rel (%p371) target = $region44
        $region43: #{tpu_custom_call.1} parent=11 // pred_region
          %s375 = ssub.s32 16, 16
          %376 = vsyncadd [#allocation18], %s375
          %s378 = sshll.u32 [#allocation17], 4
          %s379 = int_to_ptr.vmem [resolvable:$true] %s378
          %381 = dma.hbm_to_vmem [thread:$0]  %s9, 16, %s379, [#allocation18]
        $region44: #{tpu_custom_call.1} parent=11 // pred_fallthru
          _
      $region12: #{tpu_custom_call.1} parent=5 // pred_fallthru
        _
      %p382 = scmp.lt.s32.totalorder %s29, 2
      // Predicated region
      $region45: #{tpu_custom_call.1} parent=5 // pred_check
        %p383 = pneg %p382
      $region46: #{tpu_custom_call.1} parent=5 // pred_check_branch
        %385 = sbr.rel (%p383) target = $region48
      $region47: #{tpu_custom_call.1} parent=5 // pred_region
        // Predicated region
        $region49: #{tpu_custom_call.1} parent=47 // pred_check
          %p386 = pneg %p49
        $region50: #{tpu_custom_call.1} parent=47 // pred_check_branch
          %388 = sbr.rel (%p386) target = $region52
        $region51: #{tpu_custom_call.1} parent=47 // pred_region
          %s389 = sand.u32 %s39, 1
          %s390 = scalar_lea.sflag [#allocation3], %s389
          %s391 = sand.u32 %s39, 1
          %s392 = smul.addr %s391, 16
          %s393 = scalar_lea.vmem [#allocation2], %s392
          %s395 = ssub.s32 256, 256
          %396 = vsyncadd %s390, %s395
          %s397 = smul.addr %s29, 2
          %s398 = smul.addr %s397, 128
          %s399 = scalar_lea.hbm %s0, %s398
          %s400 = sshll.u32 %s393, 4
          %s401 = int_to_ptr.vmem [resolvable:$true] %s400
          %406 = dma.hbm_to_vmem [thread:$0]  %s399, 256, %s401, %s390, 128, 128, 8
        $region52: #{tpu_custom_call.1} parent=47 // pred_fallthru
          _
        // Predicated region
        $region53: #{tpu_custom_call.1} parent=47 // pred_check
          %p407 = pneg %p75
        $region54: #{tpu_custom_call.1} parent=47 // pred_check_branch
          %409 = sbr.rel (%p407) target = $region56
        $region55: #{tpu_custom_call.1} parent=47 // pred_region
          %s410 = sand.u32 %s29, 1
          %s411 = scalar_lea.sflag [#allocation6], %s410
          %s412 = sand.u32 %s65, 1
          %s413 = scalar_lea.vmem [#allocation5], %s412
          %s415 = ssub.s32 16, 16
          %416 = vsyncadd %s411, %s415
          %s417 = smul.addr %s29, 16
          %s418 = scalar_lea.hbm %s1, %s417
          %s420 = sshll.u32 %s413, 4
          %s421 = int_to_ptr.vmem [resolvable:$true] %s420
          %423 = dma.hbm_to_vmem [thread:$0]  %s418, 16, %s421, %s411
        $region56: #{tpu_custom_call.1} parent=47 // pred_fallthru
          _
      $region48: #{tpu_custom_call.1} parent=5 // pred_fallthru
        _
      %p424 = scmp.le.s32.totalorder 1, %s29
      %p425 = scmp.lt.s32.totalorder %s29, 3
      %p426 = pnand %p424, %p425
      %p427 = pneg %p426
      // Predicated region
      $region57: #{tpu_custom_call.1} parent=5 // pred_check
        _
      $region58: #{tpu_custom_call.1} parent=5 // pred_check_branch
        %429 = sbr.rel (%p426) target = $region60
      $region59: #{tpu_custom_call.1} parent=5 // pred_region
        %s430 = ssub.s32 %s29, 1
        %s431 = sand.u32 %s42, 1
        %s432 = scalar_lea.sflag [#allocation3], %s431
        %s433 = sand.u32 %s42, 1
        %s434 = smul.addr %s433, 16
        %s435 = scalar_lea.vmem [#allocation2], %s434
        // Predicated region
        $region61: #{tpu_custom_call.1} parent=59 // pred_check
          %p436 = pneg %p55
        $region62: #{tpu_custom_call.1} parent=59 // pred_check_branch
          %438 = sbr.rel (%p436) target = $region64
        $region63: #{tpu_custom_call.1} parent=59 // pred_region
          %439 = dma.done %s432, 256
        $region64: #{tpu_custom_call.1} parent=59 // pred_fallthru
          _
        %s440 = sand.u32 %s34, 1
        %s441 = scalar_lea.sflag [#allocation6], %s440
        %s442 = sand.u32 %s68, 1
        %s443 = scalar_lea.vmem [#allocation5], %s442
        // Predicated region
        $region65: #{tpu_custom_call.1} parent=59 // pred_check
          %p444 = pneg %p81
        $region66: #{tpu_custom_call.1} parent=59 // pred_check_branch
          %446 = sbr.rel (%p444) target = $region68
        $region67: #{tpu_custom_call.1} parent=59 // pred_region
          %447 = dma.done %s441, 16
        $region68: #{tpu_custom_call.1} parent=59 // pred_fallthru
          _
        // Predicated region
        $region69: #{tpu_custom_call.1} parent=59 // pred_check
          %p448 = pneg %p102
        $region70: #{tpu_custom_call.1} parent=59 // pred_check_branch
          %450 = sbr.rel (%p448) target = $region72
        $region71: #{tpu_custom_call.1} parent=59 // pred_region
          %451 = dma.done [#allocation6], 128
        $region72: #{tpu_custom_call.1} parent=59 // pred_fallthru
          _
        // Predicated region
        $region73: #{tpu_custom_call.1} parent=59 // pred_check
          %p452 = pneg %p123
        $region74: #{tpu_custom_call.1} parent=59 // pred_check_branch
          %454 = sbr.rel (%p452) target = $region76
        $region75: #{tpu_custom_call.1} parent=59 // pred_region
          %455 = dma.done [#allocation9], 512
        $region76: #{tpu_custom_call.1} parent=59 // pred_fallthru
          _
        // Predicated region
        $region77: #{tpu_custom_call.1} parent=59 // pred_check
          %p456 = pneg %p144
        $region78: #{tpu_custom_call.1} parent=59 // pred_check_branch
          %458 = sbr.rel (%p456) target = $region80
        $region79: #{tpu_custom_call.1} parent=59 // pred_region
          %459 = dma.done [#allocation9], 16
        $region80: #{tpu_custom_call.1} parent=59 // pred_fallthru
          _
        // Predicated region
        $region81: #{tpu_custom_call.1} parent=59 // pred_check
          %p460 = pneg %p165
        $region82: #{tpu_custom_call.1} parent=59 // pred_check_branch
          %462 = sbr.rel (%p460) target = $region84
        $region83: #{tpu_custom_call.1} parent=59 // pred_region
          %463 = dma.done [#allocation12], 16
        $region84: #{tpu_custom_call.1} parent=59 // pred_fallthru
          _
        // Predicated region
        $region85: #{tpu_custom_call.1} parent=59 // pred_check
          %p464 = pneg %p186
        $region86: #{tpu_custom_call.1} parent=59 // pred_check_branch
          %466 = sbr.rel (%p464) target = $region88
        $region87: #{tpu_custom_call.1} parent=59 // pred_region
          %467 = dma.done [#allocation12], 512
        $region88: #{tpu_custom_call.1} parent=59 // pred_fallthru
          _
        // Predicated region
        $region89: #{tpu_custom_call.1} parent=59 // pred_check
          %p468 = pneg %p207
        $region90: #{tpu_custom_call.1} parent=59 // pred_check_branch
          %470 = sbr.rel (%p468) target = $region92
        $region91: #{tpu_custom_call.1} parent=59 // pred_region
          %471 = dma.done [#allocation15], 16
        $region92: #{tpu_custom_call.1} parent=59 // pred_fallthru
          _
        // Predicated region
        $region93: #{tpu_custom_call.1} parent=59 // pred_check
          %p472 = pneg %p228
        $region94: #{tpu_custom_call.1} parent=59 // pred_check_branch
          %474 = sbr.rel (%p472) target = $region96
        $region95: #{tpu_custom_call.1} parent=59 // pred_region
          %475 = dma.done [#allocation15], 16
        $region96: #{tpu_custom_call.1} parent=59 // pred_fallthru
          _
        // Predicated region
        $region97: #{tpu_custom_call.1} parent=59 // pred_check
          %p476 = pneg %p249
        $region98: #{tpu_custom_call.1} parent=59 // pred_check_branch
          %478 = sbr.rel (%p476) target = $region100
        $region99: #{tpu_custom_call.1} parent=59 // pred_region
          %479 = dma.done [#allocation18], 16
        $region100: #{tpu_custom_call.1} parent=59 // pred_fallthru
          _
        %s480 = sand.u32 %s42, 1
        %s481 = scalar_lea.sflag [#allocation3], %s480
        %s482 = sand.u32 %s42, 1
        %s483 = smul.addr %s482, 16
        %s484 = scalar_lea.vmem [#allocation2], %s483
        %p485 = pneg %p55
        %p486 = pneg %p52
        %s487 = sand.u32 %s34, 1
        %s488 = scalar_lea.sflag [#allocation6], %s487
        %s489 = sand.u32 %s68, 1
        %s490 = scalar_lea.vmem [#allocation5], %s489
        %p491 = pneg %p81
        %p492 = pneg %p78
        %p493 = pneg %p102
        %p494 = pneg %p99
        %p495 = pneg %p123
        %p496 = pneg %p120
        %p497 = pneg %p144
        %p498 = pneg %p141
        %p499 = pneg %p165
        %p500 = pneg %p162
        %p501 = pneg %p186
        %p502 = pneg %p183
        %p503 = pneg %p207
        %p504 = pneg %p204
        %p505 = pneg %p228
        %p506 = pneg %p225
        %p507 = pneg %p249
        %p508 = pneg %p246
        %p509 = pneg %p275
        %p510 = pneg %p272
        %s511 = sand.u32 %s262, 1
        %s512 = scalar_lea.sflag [#allocation4], %s511
        %s513 = sand.u32 %s262, 1
        %s514 = scalar_lea.vmem [#allocation19], %s513
        %v516 = vld [vmem:[%s435] sm:$0xff]
        %v517 = vld [vmem:[%s435 + $0x8] sm:$0xff]
        %vm520 = vcmask 1042432
        %v521 = vrot.slane %v516, 5
        %v522 = vrot.slane %v517, 5
        %v523 = vsel %vm520, %v521, %v522
        %v527 = vsel %vm520, 0.0, %v521
        %v528 = vsel %vm520, %v522, 0.0
        %531 = vrot.lane.b32.xlu0 %v527, 32
        %v532 = vpop.permute.xlu0 %531
        %533 = vrot.lane.b32.xlu0 %v523, 32
        %v534 = vpop.permute.xlu0 %533
        %535 = vrot.lane.b32.xlu0 %v528, 32
        %v536 = vpop.permute.xlu0 %535
        %vm540 = vcmask 261120
        %v541 = vsel %vm540, %v527, %v532
        %v542 = vsel %vm540, %v523, %v534
        %v543 = vsel %vm540, %v528, %v536
        %v544 = vld [vmem:[#allocation7] sm:$0x1]
        %v545 = vlaneseq
        %v546 = vshrl.u32 %v545, 7
        %v547 = vsub.s32 0, %v546
        %v548 = vrot.slane %v544, %v547
        %v549 = vmul.f32 %v541, %v548
        %v550 = vmul.f32 %v542, %v548
        %v551 = vadd.f32 %v549, 0.0
        %v552 = vadd.f32 %v550, 0.0
        %v553 = vld [vmem:[#allocation7 + $0x1] sm:$0x1]
        %v554 = vlaneseq
        %v555 = vshrl.u32 %v554, 7
        %v556 = vsub.s32 0, %v555
        %v557 = vrot.slane %v553, %v556
        %v558 = vmul.f32 %v541, %v557
        %v559 = vmul.f32 %v542, %v557
        %v560 = vmul.f32 %v543, %v557
        %vm564 = vcmask 1046528
        %v565 = vrot.slane %v558, 1
        %v566 = vrot.slane %v559, 1
        %v567 = vsel %vm564, %v565, %v566
        %v568 = vrot.slane %v560, 1
        %v569 = vsel %vm564, %v566, %v568
        %v572 = vadd.f32 %v551, %v567
        %v573 = vadd.f32 %v552, %v569
        %v574 = vld [vmem:[#allocation7 + $0x2] sm:$0x1]
        %v575 = vlaneseq
        %v576 = vshrl.u32 %v575, 7
        %v577 = vsub.s32 0, %v576
        %v578 = vrot.slane %v574, %v577
        %v579 = vmul.f32 %v541, %v578
        %v580 = vmul.f32 %v542, %v578
        %v581 = vmul.f32 %v543, %v578
        %vm585 = vcmask 1045504
        %v586 = vrot.slane %v579, 2
        %v587 = vrot.slane %v580, 2
        %v588 = vsel %vm585, %v586, %v587
        %v589 = vrot.slane %v581, 2
        %v590 = vsel %vm585, %v587, %v589
        %v593 = vadd.f32 %v572, %v588
        %v594 = vadd.f32 %v573, %v590
        %v595 = vld [vmem:[#allocation7 + $0x3] sm:$0x1]
        %v596 = vlaneseq
        %v597 = vshrl.u32 %v596, 7
        %v598 = vsub.s32 0, %v597
        %v599 = vrot.slane %v595, %v598
        %v600 = vmul.f32 %v541, %v599
        %v601 = vmul.f32 %v542, %v599
        %v602 = vmul.f32 %v543, %v599
        %vm606 = vcmask 1044480
        %v607 = vrot.slane %v600, 3
        %v608 = vrot.slane %v601, 3
        %v609 = vsel %vm606, %v607, %v608
        %v610 = vrot.slane %v602, 3
        %v611 = vsel %vm606, %v608, %v610
        %v614 = vadd.f32 %v593, %v609
        %v615 = vadd.f32 %v594, %v611
        %v616 = vld [vmem:[#allocation7 + $0x4] sm:$0x1]
        %v617 = vlaneseq
        %v618 = vshrl.u32 %v617, 7
        %v619 = vsub.s32 0, %v618
        %v620 = vrot.slane %v616, %v619
        %v621 = vmul.f32 %v541, %v620
        %v622 = vmul.f32 %v542, %v620
        %v623 = vmul.f32 %v543, %v620
        %vm627 = vcmask 1043456
        %v628 = vrot.slane %v621, 4
        %v629 = vrot.slane %v622, 4
        %v630 = vsel %vm627, %v628, %v629
        %v631 = vrot.slane %v623, 4
        %v632 = vsel %vm627, %v629, %v631
        %v635 = vadd.f32 %v614, %v630
        %v636 = vadd.f32 %v615, %v632
        %v637 = vld [vmem:[#allocation7 + $0x5] sm:$0x1]
        %v638 = vlaneseq
        %v639 = vshrl.u32 %v638, 7
        %v640 = vsub.s32 0, %v639
        %v641 = vrot.slane %v637, %v640
        %v642 = vmul.f32 %v541, %v641
        %v643 = vmul.f32 %v542, %v641
        %v644 = vmul.f32 %v543, %v641
        %v648 = vrot.slane %v642, 5
        %v649 = vrot.slane %v643, 5
        %v650 = vsel %vm520, %v648, %v649
        %v651 = vrot.slane %v644, 5
        %v652 = vsel %vm520, %v649, %v651
        %v655 = vadd.f32 %v635, %v650
        %v656 = vadd.f32 %v636, %v652
        %v657 = vld [vmem:[#allocation7 + $0x6] sm:$0x1]
        %v658 = vlaneseq
        %v659 = vshrl.u32 %v658, 7
        %v660 = vsub.s32 0, %v659
        %v661 = vrot.slane %v657, %v660
        %v662 = vmul.f32 %v541, %v661
        %v663 = vmul.f32 %v542, %v661
        %v664 = vmul.f32 %v543, %v661
        %vm668 = vcmask 1041408
        %v669 = vrot.slane %v662, 6
        %v670 = vrot.slane %v663, 6
        %v671 = vsel %vm668, %v669, %v670
        %v672 = vrot.slane %v664, 6
        %v673 = vsel %vm668, %v670, %v672
        %v676 = vadd.f32 %v655, %v671
        %v677 = vadd.f32 %v656, %v673
        %v678 = vpack.c.bf16 %v677, %v676
        %v679 = vld [vmem:[#allocation8] sm:$0xf]
        %v680 = vld [vmem:[#allocation8 + $0x4] sm:$0xf]
        %v681 = vld [vmem:[#allocation8 + $0x8] sm:$0xf]
        %v682 = vld [vmem:[#allocation8 + $0xc] sm:$0xf]
        %v683 = vld [vmem:[#allocation8 + $0x10] sm:$0xf]
        %v684 = vld [vmem:[#allocation8 + $0x14] sm:$0xf]
        %v685 = vld [vmem:[#allocation8 + $0x18] sm:$0xf]
        %v686 = vld [vmem:[#allocation8 + $0x1c] sm:$0xf]
        %v695 = vunpack.c.l.b16 %v679
        %v696 = vunpack.c.l.b16 %v680
        %v697 = vunpack.c.l.b16 %v681
        %v698 = vunpack.c.l.b16 %v682
        %v699 = vunpack.c.l.b16 %v683
        %v700 = vunpack.c.l.b16 %v684
        %v701 = vunpack.c.l.b16 %v685
        %v702 = vunpack.c.l.b16 %v686
        %v703 = vpack.c.b16 %v696, %v695
        %v704 = vpack.c.b16 %v698, %v697
        %v705 = vpack.c.b16 %v700, %v699
        %v706 = vpack.c.b16 %v702, %v701
        %vm711 = vcmask 523264
        %v713 = vsel %vm711, %v678, 0
        %715 = vmatprep.subr.bf16.mxu0 0
        %716 = vmatpush1.bf16.msra.mxu0 %v703
        %717 = vmatprep.subr.bf16.mxu0 0
        %718 = vmatpush1.bf16.msra.mxu0 %v704
        %719 = vmatprep.subr.bf16.mxu0 0
        %720 = vmatpush1.bf16.msra.mxu0 %v705
        %721 = vmatprep.subr.bf16.mxu0 0
        %722 = vmatpush1.bf16.msra.mxu0 %v706
        %723 = vmatprep.subr.bf16.mxu0 0
        %724 = vmatpush1.bf16.msra.mxu0 0
        %725 = vmatprep.subr.bf16.mxu0 0
        %726 = vmatpush1.bf16.msra.mxu0 0
        %727 = vmatprep.subr.bf16.mxu0 0
        %728 = vmatpush1.bf16.msra.mxu0 0
        %729 = vmatprep.subr.bf16.mxu0 0
        %730 = vmatpush1.bf16.msra.mxu0 0
        %731 = vmatprep.subr.bf16.mxu0 0
        %732 = vmatpush1.bf16.msra.mxu0 0
        %733 = vmatprep.subr.bf16.mxu0 0
        %734 = vmatpush1.bf16.msra.mxu0 0
        %735 = vmatprep.subr.bf16.mxu0 0
        %736 = vmatpush1.bf16.msra.mxu0 0
        %737 = vmatprep.subr.bf16.mxu0 0
        %738 = vmatpush1.bf16.msra.mxu0 0
        %739 = vmatprep.subr.bf16.mxu0 0
        %740 = vmatpush1.bf16.msra.mxu0 0
        %741 = vmatprep.subr.bf16.mxu0 0
        %742 = vmatpush1.bf16.msra.mxu0 0
        %743 = vmatprep.subr.bf16.mxu0 0
        %744 = vmatpush1.bf16.msra.mxu0 0
        %745 = vmatprep.subr.bf16.mxu0 0
        %746 = vmatpush1.bf16.msra.mxu0 0
        %747 = vmatprep.mubr.bf16.mxu0 0
        %748 = vmatmul.mubr.bf16.gmra.mrb[0].mxu0 %v713
        %v749 = vpop.f32.mrb[0].mxu0
        %v750 = vadd.f32 0.0, %v749
        %v751 = vpop.f32.mrb[0].mxu0
        %v752 = vpop.f32.mrb[0].mxu0
        %v753 = vadd.f32 0.0, %v752
        %v754 = vpop.f32.mrb[0].mxu0
        %755 = vdwg.mxu0
        %v756 = vmax.f32 %v750, 0.0
        %v757 = vmax.f32 %v753, 0.0
        %v758 = vld [vmem:[#allocation10] sm:$0x1]
        %v760 = vlaneseq
        %v761 = vshrl.u32 %v760, 7
        %v762 = vsub.s32 0, %v761
        %v763 = vrot.slane %v758, %v762
        %v765 = vmul.f32 %v756, %v763
        %v766 = vmul.f32 %v757, %v763
        %v767 = vld [vmem:[#allocation11] sm:$0x1]
        %v769 = vlaneseq
        %v770 = vshrl.u32 %v769, 7
        %v771 = vsub.s32 0, %v770
        %v772 = vrot.slane %v767, %v771
        %v774 = vadd.f32 %v765, %v772
        %v775 = vadd.f32 %v766, %v772
        %v776 = vlaneseq
        %v777 = vshrl.u32 %v776, 7
        %v778 = vadd.s32 %v777, 8
        %v779 = vld [vmem:[%s443] sm:$0x1]
        %v780 = vlaneseq
        %v781 = vshrl.u32 %v780, 7
        %v782 = vsub.s32 0, %v781
        %v783 = vrot.slane %v779, %v782
        %vm784 = vcmp.lt.s32.totalorder %v777, %v783
        %vm785 = vcmp.lt.s32.totalorder %v778, %v783
        %788 = vrot.lane.b32.xlu0 %v774, 96
        %v789 = vpop.permute.xlu0 %788
        %790 = vrot.lane.b32.xlu0 %v775, 96
        %v791 = vpop.permute.xlu0 %790
        %v794 = vsel %vm784, %v789, -1e+09
        %v795 = vsel %vm785, %v791, -1e+09
        %v796 = vsel %vm540, %v794, -inf
        %v797 = vsel %vm540, %v795, -inf
        %v798 = vmax.f32 %v796, %v797
        %v799 = vrot.slane %v798, 4
        %v800 = vmax.f32 %v798, %v799
        %v801 = vrot.slane %v800, 2
        %v802 = vmax.f32 %v800, %v801
        %v803 = vrot.slane %v802, 1
        %v804 = vmax.f32 %v802, %v803
        %v805 = vsub.f32 %v794, %v804
        %v806 = vsub.f32 %v795, %v804
        %v807 = vmul.f32 %v805, 1.442695
        %v808 = vpow.pop %v807
        %v809 = vmul.f32 %v806, 1.442695
        %v810 = vpow.pop %v809
        %v811 = vsel %vm540, %v808, 0.0
        %v812 = vsel %vm540, %v810, 0.0
        %v813 = vadd.f32 %v811, %v812
        %v814 = vrot.slane %v813, 4
        %v815 = vadd.f32 %v813, %v814
        %v816 = vrot.slane %v815, 2
        %v817 = vadd.f32 %v815, %v816
        %v818 = vrot.slane %v817, 1
        %v819 = vadd.f32 %v817, %v818
        %v820 = vrcp.pop %v819
        %v821 = vmul.f32 %v808, %v820
        %v822 = vmul.f32 %v810, %v820
        %v823 = vmul.f32 %v774, %v821
        %v824 = vmul.f32 %v775, %v822
        %v825 = vsel %vm540, %v823, 0.0
        %v826 = vsel %vm540, %v824, 0.0
        %v827 = vadd.f32 %v825, %v826
        %v828 = vrot.slane %v827, 4
        %v829 = vadd.f32 %v827, %v828
        %v830 = vrot.slane %v829, 2
        %v831 = vadd.f32 %v829, %v830
        %v832 = vrot.slane %v831, 1
        %v833 = vadd.f32 %v831, %v832
        %v834 = vsel %vm540, %v774, -inf
        %v835 = vsel %vm540, %v775, -inf
        %v836 = vmax.f32 %v834, %v835
        %v837 = vrot.slane %v836, 4
        %v838 = vmax.f32 %v836, %v837
        %v839 = vrot.slane %v838, 2
        %v840 = vmax.f32 %v838, %v839
        %v841 = vrot.slane %v840, 1
        %v842 = vmax.f32 %v840, %v841
        %844 = vrot.lane.b32.xlu0 %v842, 32
        %v845 = vpop.permute.xlu0 %844
        %v847 = vsel %vm540, %v833, %v845
        %v848 = vpack.c.bf16 %v847, %v847
        %v849 = vld [vmem:[#allocation13] sm:$0xf]
        %v850 = vld [vmem:[#allocation13 + $0x4] sm:$0xf]
        %v851 = vld [vmem:[#allocation13 + $0x8] sm:$0xf]
        %v852 = vld [vmem:[#allocation13 + $0xc] sm:$0xf]
        %v853 = vld [vmem:[#allocation13 + $0x10] sm:$0xf]
        %v854 = vld [vmem:[#allocation13 + $0x14] sm:$0xf]
        %v855 = vld [vmem:[#allocation13 + $0x18] sm:$0xf]
        %v856 = vld [vmem:[#allocation13 + $0x1c] sm:$0xf]
        %v857 = vld [vmem:[#allocation14] sm:$0x1]
        %v866 = vunpack.c.l.b16 %v849
        %v867 = vunpack.c.l.b16 %v850
        %v868 = vunpack.c.l.b16 %v851
        %v869 = vunpack.c.l.b16 %v852
        %v870 = vunpack.c.l.b16 %v853
        %v871 = vunpack.c.l.b16 %v854
        %v872 = vunpack.c.l.b16 %v855
        %v873 = vunpack.c.l.b16 %v856
        %v874 = vpack.c.b16 %v867, %v866
        %v875 = vpack.c.b16 %v869, %v868
        %v876 = vpack.c.b16 %v871, %v870
        %v877 = vpack.c.b16 %v873, %v872
        %v883 = vsel %vm711, %v848, 0
        %885 = vmatprep.subr.bf16.mxu0 0
        %886 = vmatpush1.bf16.msra.mxu0 %v874
        %887 = vmatprep.subr.bf16.mxu0 0
        %888 = vmatpush1.bf16.msra.mxu0 %v875
        %889 = vmatprep.subr.bf16.mxu0 0
        %890 = vmatpush1.bf16.msra.mxu0 %v876
        %891 = vmatprep.subr.bf16.mxu0 0
        %892 = vmatpush1.bf16.msra.mxu0 %v877
        %893 = vmatprep.subr.bf16.mxu0 0
        %894 = vmatpush1.bf16.msra.mxu0 0
        %895 = vmatprep.subr.bf16.mxu0 0
        %896 = vmatpush1.bf16.msra.mxu0 0
        %897 = vmatprep.subr.bf16.mxu0 0
        %898 = vmatpush1.bf16.msra.mxu0 0
        %899 = vmatprep.subr.bf16.mxu0 0
        %900 = vmatpush1.bf16.msra.mxu0 0
        %901 = vmatprep.subr.bf16.mxu0 0
        %902 = vmatpush1.bf16.msra.mxu0 0
        %903 = vmatprep.subr.bf16.mxu0 0
        %904 = vmatpush1.bf16.msra.mxu0 0
        %905 = vmatprep.subr.bf16.mxu0 0
        %906 = vmatpush1.bf16.msra.mxu0 0
        %907 = vmatprep.subr.bf16.mxu0 0
        %908 = vmatpush1.bf16.msra.mxu0 0
        %909 = vmatprep.subr.bf16.mxu0 0
        %910 = vmatpush1.bf16.msra.mxu0 0
        %911 = vmatprep.subr.bf16.mxu0 0
        %912 = vmatpush1.bf16.msra.mxu0 0
        %913 = vmatprep.subr.bf16.mxu0 0
        %914 = vmatpush1.bf16.msra.mxu0 0
        %915 = vmatprep.subr.bf16.mxu0 0
        %916 = vmatpush1.bf16.msra.mxu0 0
        %917 = vmatprep.mubr.bf16.mxu0 0
        %918 = vmatmul.mubr.bf16.gmra.mrb[0].mxu0 %v883
        %v919 = vpop.f32.mrb[0].mxu0
        %v920 = vadd.f32 %v857, %v919
        %v921 = vpop.f32.mrb[0].mxu0
        %v922 = vpop.f32.mrb[0].mxu0
        %v923 = vpop.f32.mrb[0].mxu0
        %924 = vdwg.mxu0
        %v925 = vmax.f32 %v920, 0.0
        %v926 = vld [vmem:[#allocation16] sm:$0x1]
        %v927 = vmul.f32 %v925, %v926
        %v928 = vld [vmem:[#allocation17] sm:$0x1]
        %v929 = vadd.f32 %v927, %v928
        %930 = vst [vmem:[%s514] sm:$0x1] %v929
        %s931 = sand.u32 %s262, 1
        %s932 = scalar_lea.sflag [#allocation4], %s931
        %s933 = sand.u32 %s262, 1
        %s934 = scalar_lea.vmem [#allocation19], %s933
        // Predicated region
        $region101: #{tpu_custom_call.1} parent=59 // pred_check
          %p935 = pneg %p272
        $region102: #{tpu_custom_call.1} parent=59 // pred_check_branch
          %937 = sbr.rel (%p935) target = $region104
        $region103: #{tpu_custom_call.1} parent=59 // pred_region
          %s939 = ssub.s32 16, 16
          %940 = vsyncadd %s932, %s939
          %s941 = smul.addr %s34, 16
          %s942 = scalar_lea.hbm %s10, %s941
          %s944 = sshll.u32 %s934, 4
          %s945 = int_to_ptr.vmem [resolvable:$true] %s944
          %947 = dma.vmem_to_hbm [thread:$0]  %s945, 16, %s942, %s932
        $region104: #{tpu_custom_call.1} parent=59 // pred_fallthru
          _
      $region60: #{tpu_custom_call.1} parent=5 // pred_fallthru
        _
      %p948 = scmp.le.s32.totalorder 2, %s29
      // Predicated region
      $region105: #{tpu_custom_call.1} parent=5 // pred_check
        %p949 = pneg %p948
      $region106: #{tpu_custom_call.1} parent=5 // pred_check_branch
        %951 = sbr.rel (%p949) target = $region108
      $region107: #{tpu_custom_call.1} parent=5 // pred_region
        %s952 = ssub.s32 %s29, 2
        // Predicated region
        $region109: #{tpu_custom_call.1} parent=107 // pred_check
          %p953 = pneg %p278
        $region110: #{tpu_custom_call.1} parent=107 // pred_check_branch
          %955 = sbr.rel (%p953) target = $region112
        $region111: #{tpu_custom_call.1} parent=107 // pred_region
          %s956 = sand.u32 %s263, 1
          %s957 = scalar_lea.sflag [#allocation4], %s956
          %s958 = sand.u32 %s263, 1
          %s959 = scalar_lea.vmem [#allocation19], %s958
          %960 = dma.done %s957, 16
        $region112: #{tpu_custom_call.1} parent=107 // pred_fallthru
          _
      $region108: #{tpu_custom_call.1} parent=5 // pred_fallthru
        _
    $region6: #{tpu_custom_call.1} parent=1 // loop_footer
      %s33 = sadd.s32 1, %s29
    $region7: #{tpu_custom_call.1} parent=1 // loop_footer_branch
      %28 = sbr.rel target = $region3
    $region8: #{tpu_custom_call.1} parent=1 // loop_exit
      _
    %961 = vsyncpa [#allocation3], 1
    %s962 = scalar_lea.sflag [#allocation3], 1
    %963 = vsyncpa %s962, 1
    %964 = vsyncpa [#allocation6], 1
    %s965 = scalar_lea.sflag [#allocation6], 1
    %966 = vsyncpa %s965, 1
    %967 = vsyncpa [#allocation9], 1
    %968 = vsyncpa [#allocation12], 1
    %969 = vsyncpa [#allocation15], 1
    %970 = vsyncpa [#allocation18], 1
    %971 = vsyncpa [#allocation4], 1
    %s972 = scalar_lea.sflag [#allocation4], 1
    %973 = vsyncpa %s972, 1

</llo_original>
